<compile_context>
chip_gen: v6e
topology: v6e:2x2x1
jax: 0.10.0
libtpu: 0.0.40
codegen_flags: <defaults>
</compile_context>

<pallas_src>
import functools

import jax
import jax.numpy as jnp
from jax.experimental import pallas as pl
from jax.experimental.pallas import tpu as pltpu

_LANE = 128


def _round_up(x, m):
    return (x + m - 1) // m * m


def _ae_kernel(x_ref, *refs, out_dims, act_dtype):
    """One batch tile of the full autoencoder forward.

    refs = (w0, ..., w7, bias_pack, out_ref)
      w_i:       (d_in_pad_i, d_out_pad_i)  VMEM-resident weights
      bias_pack: (8, max_out_pad) f32       row i = zero-padded bias of layer i
      out_ref:   (TB, Fpad)
    out_dims[i] = padded output width of layer i; out_dims[-1] == Fpad.
    """
    out_ref = refs[-1]
    bias_ref = refs[-2]
    w_refs = refs[:-2]
    n = len(w_refs)

    biases = bias_ref[...]  # (8, max_out_pad) f32, tiny, resident
    h = x_ref[...]
    for i in range(n):
        w = w_refs[i][...]
        d_out = out_dims[i]
        y = jnp.dot(h.astype(w.dtype), w, preferred_element_type=jnp.float32)
        y = y + biases[i : i + 1, :d_out]
        # ReLU after every layer except the encoder bottleneck (i == 3)
        # and the final decoder layer (i == 7).
        if i not in (n // 2 - 1, n - 1):
            y = jnp.maximum(y, 0.0)
        # Carry inter-layer activations in the narrow param dtype (bf16 by
        # default) to halve vreg/VMEM traffic; final output stays f32.
        h = y if i == n - 1 else y.astype(act_dtype)
    out_ref[...] = h.astype(out_ref.dtype)


def autoencoder_forward(x, params, *, param_dtype=jnp.bfloat16, act_dtype=None,
                        batch_tile=512):
    """x: (B, F) float32; params: list of 8 (W(in,out), b(1,out)) pairs."""
    if act_dtype is None:
        # TODO(synk): on v5e (no bf16 VALU) prefer act_dtype=float32 with bf16 weights.
        act_dtype = param_dtype
    B, F = x.shape
    n = len(params)
    out_dims_true = [w.shape[1] for w, _ in params]
    assert params[0][0].shape[0] == F and out_dims_true[-1] == F

    # Pad every layer width (including the external F) up to a multiple of 128
    # lanes -> lane-dense matmuls and unmasked stores. Zero padding keeps the
    # math exact on the true lanes.
    Fp = _round_up(F, _LANE)
    pad_dims = [Fp] + [_round_up(max(d, 1), _LANE) for d in out_dims_true[:-1]] + [Fp]
    max_out_pad = max(pad_dims[1:])

    padded_ws = []
    bias_rows = []
    for i, (w, b) in enumerate(params):
        d_in_p, d_out_p = pad_dims[i], pad_dims[i + 1]
        wp = jnp.zeros((d_in_p, d_out_p), param_dtype)
        wp = wp.at[: w.shape[0], : w.shape[1]].set(w.astype(param_dtype))
        padded_ws.append(wp)
        br = jnp.zeros((max_out_pad,), jnp.float32)
        br = br.at[: b.reshape(-1).shape[0]].set(b.reshape(-1).astype(jnp.float32))
        bias_rows.append(br)
    bias_pack = jnp.stack(bias_rows, axis=0)  # (8, max_out_pad), f32

    # Batch tiling: TB multiple of 8; force >=2 grid steps when B >= 16 so the
    # "parallel" batch axis can use both v7x TensorCores.
    if B >= 16:
        TB = min(batch_tile, _round_up(pl.cdiv(B, 2), 8))
    else:
        TB = _round_up(max(B, 1), 8)
    Bp = _round_up(B, TB)
    x_p = x
    if Bp != B or Fp != F:
        x_p = jnp.pad(x, ((0, Bp - B), (0, Fp - F)))
    grid = (Bp // TB,)

    x_spec = pl.BlockSpec((TB, Fp), lambda i: (i, 0))
    out_spec = pl.BlockSpec((TB, Fp), lambda i: (i, 0))

    # Generation-aware VMEM cap (v7x only has 64 MiB per TensorCore).
    try:
        vmem_cap = int(pltpu.get_tpu_info().vmem_capacity_bytes)
    except Exception:
        vmem_cap = 64 << 20  # conservative fallback (v7x per-TC VMEM)
    vmem_cap_usable = int(vmem_cap * 0.8)

    param_bytes_1x = (sum(int(w.size) * w.dtype.itemsize for w in padded_ws)
                      + int(bias_pack.size) * 4)
    flops = sum(2 * Bp * w.shape[0] * w.shape[1] for w in padded_ws)
    cost = pl.CostEstimate(flops=flops, transcendentals=0,
                           bytes_accessed=param_bytes_1x + 2 * Bp * Fp * 4)

    kernel = functools.partial(_ae_kernel, out_dims=tuple(pad_dims[1:]),
                               act_dtype=act_dtype)

    def _call(single_buffer_params):
        # Constant block index across the batch grid -> weights/biases stay
        # VMEM-resident; single buffering avoids paying 2x VMEM for them.
        if single_buffer_params:
            pkw = dict(pipeline_mode=pl.Buffered(1))
            nbuf = 1
        else:
            pkw = {}
            nbuf = 2
        w_specs = [pl.BlockSpec(w.shape, lambda i: (0, 0), **pkw) for w in padded_ws]
        b_spec = pl.BlockSpec(bias_pack.shape, lambda i: (0, 0), **pkw)

        # VMEM budget: resident params (x buffer count) + double-buffered x/out
        # tiles + live f32 activations + headroom for Mosaic scratch.
        param_bytes = nbuf * param_bytes_1x
        io_bytes = 2 * 2 * TB * Fp * x.dtype.itemsize
        act_bytes = 4 * TB * max_out_pad * 4
        vmem_limit = min(max(param_bytes + io_bytes + act_bytes + (8 << 20),
                             32 << 20),
                         vmem_cap_usable)

        return pl.pallas_call(
            kernel,
            out_shape=jax.ShapeDtypeStruct((Bp, Fp), x.dtype),
            grid=grid,
            in_specs=[x_spec] + w_specs + [b_spec],
            out_specs=out_spec,
            compiler_params=pltpu.CompilerParams(
                dimension_semantics=("parallel",),
                vmem_limit_bytes=int(vmem_limit),
            ),
            cost_estimate=cost,
        )(x_p, *padded_ws, bias_pack)

    # TODO(synk): for very large F on v7x (64 MiB VMEM), keep only the six small
    # middle layers resident and stream W0/W7 from HBM (pl.ANY + pltpu.emit_pipeline).
    try:
        out = _call(True)
    except Exception:
        out = _call(False)  # fallback if pl.Buffered(1) is unsupported
    return out[:B, :F]


def make_params(key, feature_size):
    """Deterministic init mimicking PyTorch Linear default U(-1/sqrt(in), 1/sqrt(in)).

    Weights stored as (in, out) (transposed from PyTorch's (out, in))."""
    dims_enc = [
        feature_size,
        int(feature_size * 0.75),
        int(feature_size * 0.5),
        int(feature_size * 0.25),
        int(feature_size * 0.1),
    ]
    dims_dec = [
        int(feature_size * 0.1),
        int(feature_size * 0.25),
        int(feature_size * 0.5),
        int(feature_size * 0.75),
        feature_size,
    ]
    layer_dims = list(zip(dims_enc[:-1], dims_enc[1:])) + list(
        zip(dims_dec[:-1], dims_dec[1:])
    )

    params = []
    for (d_in, d_out) in layer_dims:
        key, kw, kb = jax.random.split(key, 3)
        bound = 1.0 / jnp.sqrt(jnp.float32(d_in))
        w = jax.random.uniform(
            kw, (d_in, d_out), jnp.float32, minval=-bound, maxval=bound
        )
        b = jax.random.uniform(
            kb, (1, d_out), jnp.float32, minval=-bound, maxval=bound
        )
        params.append((w, b))
    return params


def reference_forward(x, params, param_dtype=jnp.float32):
    """Pure-JAX reference mirroring the kernel's dtype handling."""
    h = x
    n = len(params)
    for i, (w, b) in enumerate(params):
        y = jnp.dot(h.astype(param_dtype), w.astype(param_dtype),
                    preferred_element_type=jnp.float32)
        y = y + b.astype(jnp.float32)
        if i not in (n // 2 - 1, n - 1):
            y = jnp.maximum(y, 0.0)
        h = y if i == n - 1 else y.astype(param_dtype)
    return h


if __name__ == "__main__":
    feature_size = 32
    batch = 8

    key = jax.random.PRNGKey(0)
    key, kx = jax.random.split(key)
    x = jax.random.normal(kx, (batch, feature_size), jnp.float32)
    params = make_params(key, feature_size)

    # 1) f32 params: tight parity with the PyTorch/pure-JAX math.
    out_f32 = autoencoder_forward(x, params, param_dtype=jnp.float32)
    out_f32 = jax.block_until_ready(out_f32)
    ref_f32 = reference_forward(x, params, jnp.float32)
    assert out_f32.shape == (batch, feature_size)
    assert jnp.allclose(out_f32, ref_f32, atol=1e-4, rtol=1e-4), "f32 mismatch vs reference"

    # 2) default bf16 params/activations (production path) vs matching bf16 reference.
    out_bf16 = autoencoder_forward(x, params)
    out_bf16 = jax.block_until_ready(out_bf16)
    ref_bf16 = reference_forward(x, params, jnp.bfloat16)
    assert out_bf16.shape == (batch, feature_size)
    assert jnp.allclose(out_bf16, ref_bf16, atol=2e-2, rtol=2e-2), "bf16 mismatch vs reference"

    # 3) multi-step batch grid (>=2 tiles -> exercises the parallel batch axis).
    batch2 = 48
    key, kx2 = jax.random.split(key)
    x2 = jax.random.normal(kx2, (batch2, feature_size), jnp.float32)
    out2 = autoencoder_forward(x2, params)
    out2 = jax.block_until_ready(out2)
    ref2 = reference_forward(x2, params, jnp.bfloat16)
    assert out2.shape == (batch2, feature_size)
    assert jnp.allclose(out2, ref2, atol=2e-2, rtol=2e-2), "bf16 mismatch vs reference (grid)"

    print("KERNEL_OK")
</pallas_src>

<mosaic_0001>
module attributes {stable_mosaic.version = 11 : i64} {
  func.func @_ae_kernel(%arg0: i32, %arg1: memref<8x128xf32, #tpu.memory_space<vmem>>, %arg2: memref<128x128xf32, #tpu.memory_space<vmem>>, %arg3: memref<128x128xf32, #tpu.memory_space<vmem>>, %arg4: memref<128x128xf32, #tpu.memory_space<vmem>>, %arg5: memref<128x128xf32, #tpu.memory_space<vmem>>, %arg6: memref<128x128xf32, #tpu.memory_space<vmem>>, %arg7: memref<128x128xf32, #tpu.memory_space<vmem>>, %arg8: memref<128x128xf32, #tpu.memory_space<vmem>>, %arg9: memref<128x128xf32, #tpu.memory_space<vmem>>, %arg10: memref<8x128xf32, #tpu.memory_space<vmem>>, %arg11: memref<8x128xf32, #tpu.memory_space<vmem>>) attributes {dimension_semantics = [#tpu.dimension_semantics<parallel>], iteration_bounds = array<i64: 1>, scalar_prefetch = 0 : i64, scratch_operands = 0 : i64, tpu.core_type = #tpu.core_type<tc>, window_params = [{transform_indices = @transform_0, window_bounds = array<i64: 8, 128>}, {pipeline_mode = #tpu.pipeline_mode<synchronous>, transform_indices = @transform_1, window_bounds = array<i64: 128, 128>}, {pipeline_mode = #tpu.pipeline_mode<synchronous>, transform_indices = @transform_2, window_bounds = array<i64: 128, 128>}, {pipeline_mode = #tpu.pipeline_mode<synchronous>, transform_indices = @transform_3, window_bounds = array<i64: 128, 128>}, {pipeline_mode = #tpu.pipeline_mode<synchronous>, transform_indices = @transform_4, window_bounds = array<i64: 128, 128>}, {pipeline_mode = #tpu.pipeline_mode<synchronous>, transform_indices = @transform_5, window_bounds = array<i64: 128, 128>}, {pipeline_mode = #tpu.pipeline_mode<synchronous>, transform_indices = @transform_6, window_bounds = array<i64: 128, 128>}, {pipeline_mode = #tpu.pipeline_mode<synchronous>, transform_indices = @transform_7, window_bounds = array<i64: 128, 128>}, {pipeline_mode = #tpu.pipeline_mode<synchronous>, transform_indices = @transform_8, window_bounds = array<i64: 128, 128>}, {pipeline_mode = #tpu.pipeline_mode<synchronous>, transform_indices = @transform_9, window_bounds = array<i64: 8, 128>}, {transform_indices = @transform_10, window_bounds = array<i64: 8, 128>}]} {
    %c0 = arith.constant 0 : index
    %c0_0 = arith.constant 0 : index
    %0 = vector.load %arg10[%c0, %c0_0] : memref<8x128xf32, #tpu.memory_space<vmem>>, vector<8x128xf32>
    %c0_1 = arith.constant 0 : index
    %c0_2 = arith.constant 0 : index
    %1 = vector.load %arg1[%c0_1, %c0_2] : memref<8x128xf32, #tpu.memory_space<vmem>>, vector<8x128xf32>
    %c0_3 = arith.constant 0 : index
    %c0_4 = arith.constant 0 : index
    %2 = vector.load %arg2[%c0_3, %c0_4] : memref<128x128xf32, #tpu.memory_space<vmem>>, vector<128x128xf32>
    %cst = arith.constant dense<0.000000e+00> : vector<8x128xf32>
    %3 = tpu.matmul %1, %2, %cst {dimension_numbers = #tpu.dot_dimension_numbers<[1], [0], [0], [1], [0, 0, 1, 1], [], []>} : vector<8x128xf32>, vector<128x128xf32>, vector<8x128xf32> -> vector<8x128xf32>
    %4 = vector.extract_strided_slice %0 {offsets = [0, 0], sizes = [1, 128], strides = [1, 1]} : vector<8x128xf32> to vector<1x128xf32>
    %5 = vector.broadcast %4 : vector<1x128xf32> to vector<8x128xf32>
    %6 = arith.addf %3, %5 : vector<8x128xf32>
    %cst_5 = arith.constant 0.000000e+00 : f32
    %7 = vector.broadcast %cst_5 : f32 to vector<8x128xf32>
    %8 = arith.maximumf %6, %7 : vector<8x128xf32>
    %c0_6 = arith.constant 0 : index
    %c0_7 = arith.constant 0 : index
    %9 = vector.load %arg3[%c0_6, %c0_7] : memref<128x128xf32, #tpu.memory_space<vmem>>, vector<128x128xf32>
    %cst_8 = arith.constant dense<0.000000e+00> : vector<8x128xf32>
    %10 = tpu.matmul %8, %9, %cst_8 {dimension_numbers = #tpu.dot_dimension_numbers<[1], [0], [0], [1], [0, 0, 1, 1], [], []>} : vector<8x128xf32>, vector<128x128xf32>, vector<8x128xf32> -> vector<8x128xf32>
    %11 = vector.extract_strided_slice %0 {offsets = [1, 0], sizes = [1, 128], strides = [1, 1]} : vector<8x128xf32> to vector<1x128xf32>
    %12 = vector.broadcast %11 : vector<1x128xf32> to vector<8x128xf32>
    %13 = arith.addf %10, %12 : vector<8x128xf32>
    %cst_9 = arith.constant 0.000000e+00 : f32
    %14 = vector.broadcast %cst_9 : f32 to vector<8x128xf32>
    %15 = arith.maximumf %13, %14 : vector<8x128xf32>
    %c0_10 = arith.constant 0 : index
    %c0_11 = arith.constant 0 : index
    %16 = vector.load %arg4[%c0_10, %c0_11] : memref<128x128xf32, #tpu.memory_space<vmem>>, vector<128x128xf32>
    %cst_12 = arith.constant dense<0.000000e+00> : vector<8x128xf32>
    %17 = tpu.matmul %15, %16, %cst_12 {dimension_numbers = #tpu.dot_dimension_numbers<[1], [0], [0], [1], [0, 0, 1, 1], [], []>} : vector<8x128xf32>, vector<128x128xf32>, vector<8x128xf32> -> vector<8x128xf32>
    %18 = vector.extract_strided_slice %0 {offsets = [2, 0], sizes = [1, 128], strides = [1, 1]} : vector<8x128xf32> to vector<1x128xf32>
    %19 = vector.broadcast %18 : vector<1x128xf32> to vector<8x128xf32>
    %20 = arith.addf %17, %19 : vector<8x128xf32>
    %cst_13 = arith.constant 0.000000e+00 : f32
    %21 = vector.broadcast %cst_13 : f32 to vector<8x128xf32>
    %22 = arith.maximumf %20, %21 : vector<8x128xf32>
    %c0_14 = arith.constant 0 : index
    %c0_15 = arith.constant 0 : index
    %23 = vector.load %arg5[%c0_14, %c0_15] : memref<128x128xf32, #tpu.memory_space<vmem>>, vector<128x128xf32>
    %cst_16 = arith.constant dense<0.000000e+00> : vector<8x128xf32>
    %24 = tpu.matmul %22, %23, %cst_16 {dimension_numbers = #tpu.dot_dimension_numbers<[1], [0], [0], [1], [0, 0, 1, 1], [], []>} : vector<8x128xf32>, vector<128x128xf32>, vector<8x128xf32> -> vector<8x128xf32>
    %25 = vector.extract_strided_slice %0 {offsets = [3, 0], sizes = [1, 128], strides = [1, 1]} : vector<8x128xf32> to vector<1x128xf32>
    %26 = vector.broadcast %25 : vector<1x128xf32> to vector<8x128xf32>
    %27 = arith.addf %24, %26 : vector<8x128xf32>
    %c0_17 = arith.constant 0 : index
    %c0_18 = arith.constant 0 : index
    %28 = vector.load %arg6[%c0_17, %c0_18] : memref<128x128xf32, #tpu.memory_space<vmem>>, vector<128x128xf32>
    %cst_19 = arith.constant dense<0.000000e+00> : vector<8x128xf32>
    %29 = tpu.matmul %27, %28, %cst_19 {dimension_numbers = #tpu.dot_dimension_numbers<[1], [0], [0], [1], [0, 0, 1, 1], [], []>} : vector<8x128xf32>, vector<128x128xf32>, vector<8x128xf32> -> vector<8x128xf32>
    %30 = vector.extract_strided_slice %0 {offsets = [4, 0], sizes = [1, 128], strides = [1, 1]} : vector<8x128xf32> to vector<1x128xf32>
    %31 = vector.broadcast %30 : vector<1x128xf32> to vector<8x128xf32>
    %32 = arith.addf %29, %31 : vector<8x128xf32>
    %cst_20 = arith.constant 0.000000e+00 : f32
    %33 = vector.broadcast %cst_20 : f32 to vector<8x128xf32>
    %34 = arith.maximumf %32, %33 : vector<8x128xf32>
    %c0_21 = arith.constant 0 : index
    %c0_22 = arith.constant 0 : index
    %35 = vector.load %arg7[%c0_21, %c0_22] : memref<128x128xf32, #tpu.memory_space<vmem>>, vector<128x128xf32>
    %cst_23 = arith.constant dense<0.000000e+00> : vector<8x128xf32>
    %36 = tpu.matmul %34, %35, %cst_23 {dimension_numbers = #tpu.dot_dimension_numbers<[1], [0], [0], [1], [0, 0, 1, 1], [], []>} : vector<8x128xf32>, vector<128x128xf32>, vector<8x128xf32> -> vector<8x128xf32>
    %37 = vector.extract_strided_slice %0 {offsets = [5, 0], sizes = [1, 128], strides = [1, 1]} : vector<8x128xf32> to vector<1x128xf32>
    %38 = vector.broadcast %37 : vector<1x128xf32> to vector<8x128xf32>
    %39 = arith.addf %36, %38 : vector<8x128xf32>
    %cst_24 = arith.constant 0.000000e+00 : f32
    %40 = vector.broadcast %cst_24 : f32 to vector<8x128xf32>
    %41 = arith.maximumf %39, %40 : vector<8x128xf32>
    %c0_25 = arith.constant 0 : index
    %c0_26 = arith.constant 0 : index
    %42 = vector.load %arg8[%c0_25, %c0_26] : memref<128x128xf32, #tpu.memory_space<vmem>>, vector<128x128xf32>
    %cst_27 = arith.constant dense<0.000000e+00> : vector<8x128xf32>
    %43 = tpu.matmul %41, %42, %cst_27 {dimension_numbers = #tpu.dot_dimension_numbers<[1], [0], [0], [1], [0, 0, 1, 1], [], []>} : vector<8x128xf32>, vector<128x128xf32>, vector<8x128xf32> -> vector<8x128xf32>
    %44 = vector.extract_strided_slice %0 {offsets = [6, 0], sizes = [1, 128], strides = [1, 1]} : vector<8x128xf32> to vector<1x128xf32>
    %45 = vector.broadcast %44 : vector<1x128xf32> to vector<8x128xf32>
    %46 = arith.addf %43, %45 : vector<8x128xf32>
    %cst_28 = arith.constant 0.000000e+00 : f32
    %47 = vector.broadcast %cst_28 : f32 to vector<8x128xf32>
    %48 = arith.maximumf %46, %47 : vector<8x128xf32>
    %c0_29 = arith.constant 0 : index
    %c0_30 = arith.constant 0 : index
    %49 = vector.load %arg9[%c0_29, %c0_30] : memref<128x128xf32, #tpu.memory_space<vmem>>, vector<128x128xf32>
    %cst_31 = arith.constant dense<0.000000e+00> : vector<8x128xf32>
    %50 = tpu.matmul %48, %49, %cst_31 {dimension_numbers = #tpu.dot_dimension_numbers<[1], [0], [0], [1], [0, 0, 1, 1], [], []>} : vector<8x128xf32>, vector<128x128xf32>, vector<8x128xf32> -> vector<8x128xf32>
    %51 = vector.extract_strided_slice %0 {offsets = [7, 0], sizes = [1, 128], strides = [1, 1]} : vector<8x128xf32> to vector<1x128xf32>
    %52 = vector.broadcast %51 : vector<1x128xf32> to vector<8x128xf32>
    %53 = arith.addf %50, %52 : vector<8x128xf32>
    %c0_32 = arith.constant 0 : index
    %c0_33 = arith.constant 0 : index
    %54 = vector.load %arg11[%c0_32, %c0_33] : memref<8x128xf32, #tpu.memory_space<vmem>>, vector<8x128xf32>
    tpu.vector_store %arg11[%c0_32, %c0_33], %53 {strides = array<i32>} : memref<8x128xf32, #tpu.memory_space<vmem>>, vector<8x128xf32>,
    return
  }
  func.func @transform_0(%arg0: i32) -> (i32, i32) {
    %c0_i32 = arith.constant 0 : i32
    %c0_i32_0 = arith.constant 0 : i32
    return %arg0, %c0_i32 : i32, i32
  }
  func.func @transform_1(%arg0: i32) -> (i32, i32) {
    %c0_i32 = arith.constant 0 : i32
    %c0_i32_0 = arith.constant 0 : i32
    %c0_i32_1 = arith.constant 0 : i32
    return %c0_i32, %c0_i32_0 : i32, i32
  }
  func.func @transform_2(%arg0: i32) -> (i32, i32) {
    %c0_i32 = arith.constant 0 : i32
    %c0_i32_0 = arith.constant 0 : i32
    %c0_i32_1 = arith.constant 0 : i32
    return %c0_i32, %c0_i32_0 : i32, i32
  }
  func.func @transform_3(%arg0: i32) -> (i32, i32) {
    %c0_i32 = arith.constant 0 : i32
    %c0_i32_0 = arith.constant 0 : i32
    %c0_i32_1 = arith.constant 0 : i32
    return %c0_i32, %c0_i32_0 : i32, i32
  }
  func.func @transform_4(%arg0: i32) -> (i32, i32) {
    %c0_i32 = arith.constant 0 : i32
    %c0_i32_0 = arith.constant 0 : i32
    %c0_i32_1 = arith.constant 0 : i32
    return %c0_i32, %c0_i32_0 : i32, i32
  }
  func.func @transform_5(%arg0: i32) -> (i32, i32) {
    %c0_i32 = arith.constant 0 : i32
    %c0_i32_0 = arith.constant 0 : i32
    %c0_i32_1 = arith.constant 0 : i32
    return %c0_i32, %c0_i32_0 : i32, i32
  }
  func.func @transform_6(%arg0: i32) -> (i32, i32) {
    %c0_i32 = arith.constant 0 : i32
    %c0_i32_0 = arith.constant 0 : i32
    %c0_i32_1 = arith.constant 0 : i32
    return %c0_i32, %c0_i32_0 : i32, i32
  }
  func.func @transform_7(%arg0: i32) -> (i32, i32) {
    %c0_i32 = arith.constant 0 : i32
    %c0_i32_0 = arith.constant 0 : i32
    %c0_i32_1 = arith.constant 0 : i32
    return %c0_i32, %c0_i32_0 : i32, i32
  }
  func.func @transform_8(%arg0: i32) -> (i32, i32) {
    %c0_i32 = arith.constant 0 : i32
    %c0_i32_0 = arith.constant 0 : i32
    %c0_i32_1 = arith.constant 0 : i32
    return %c0_i32, %c0_i32_0 : i32, i32
  }
  func.func @transform_9(%arg0: i32) -> (i32, i32) {
    %c0_i32 = arith.constant 0 : i32
    %c0_i32_0 = arith.constant 0 : i32
    %c0_i32_1 = arith.constant 0 : i32
    return %c0_i32, %c0_i32_0 : i32, i32
  }
  func.func @transform_10(%arg0: i32) -> (i32, i32) {
    %c0_i32 = arith.constant 0 : i32
    %c0_i32_0 = arith.constant 0 : i32
    return %arg0, %c0_i32 : i32, i32
  }
}

module attributes {stable_mosaic.version = 11 : i64} {
  func.func @_ae_kernel(%arg0: i32, %arg1: memref<8x128xf32, #tpu.memory_space<vmem>>, %arg2: memref<128x128xf32, #tpu.memory_space<vmem>>, %arg3: memref<128x128xf32, #tpu.memory_space<vmem>>, %arg4: memref<128x128xf32, #tpu.memory_space<vmem>>, %arg5: memref<128x128xf32, #tpu.memory_space<vmem>>, %arg6: memref<128x128xf32, #tpu.memory_space<vmem>>, %arg7: memref<128x128xf32, #tpu.memory_space<vmem>>, %arg8: memref<128x128xf32, #tpu.memory_space<vmem>>, %arg9: memref<128x128xf32, #tpu.memory_space<vmem>>, %arg10: memref<8x128xf32, #tpu.memory_space<vmem>>, %arg11: memref<8x128xf32, #tpu.memory_space<vmem>>) attributes {dimension_semantics = [#tpu.dimension_semantics<parallel>], iteration_bounds = array<i64: 1>, scalar_prefetch = 0 : i64, scratch_operands = 0 : i64, tpu.core_type = #tpu.core_type<tc>, window_params = [{transform_indices = @transform_0, window_bounds = array<i64: 8, 128>}, {pipeline_mode = #tpu.pipeline_mode<synchronous>, transform_indices = @transform_1, window_bounds = array<i64: 128, 128>}, {pipeline_mode = #tpu.pipeline_mode<synchronous>, transform_indices = @transform_2, window_bounds = array<i64: 128, 128>}, {pipeline_mode = #tpu.pipeline_mode<synchronous>, transform_indices = @transform_3, window_bounds = array<i64: 128, 128>}, {pipeline_mode = #tpu.pipeline_mode<synchronous>, transform_indices = @transform_4, window_bounds = array<i64: 128, 128>}, {pipeline_mode = #tpu.pipeline_mode<synchronous>, transform_indices = @transform_5, window_bounds = array<i64: 128, 128>}, {pipeline_mode = #tpu.pipeline_mode<synchronous>, transform_indices = @transform_6, window_bounds = array<i64: 128, 128>}, {pipeline_mode = #tpu.pipeline_mode<synchronous>, transform_indices = @transform_7, window_bounds = array<i64: 128, 128>}, {pipeline_mode = #tpu.pipeline_mode<synchronous>, transform_indices = @transform_8, window_bounds = array<i64: 128, 128>}, {pipeline_mode = #tpu.pipeline_mode<synchronous>, transform_indices = @transform_9, window_bounds = array<i64: 8, 128>}, {transform_indices = @transform_10, window_bounds = array<i64: 8, 128>}]} {
    %c0 = arith.constant 0 : index
    %c0_0 = arith.constant 0 : index
    %0 = vector.load %arg10[%c0, %c0_0] : memref<8x128xf32, #tpu.memory_space<vmem>>, vector<8x128xf32>
    %c0_1 = arith.constant 0 : index
    %c0_2 = arith.constant 0 : index
    %1 = vector.load %arg1[%c0_1, %c0_2] : memref<8x128xf32, #tpu.memory_space<vmem>>, vector<8x128xf32>
    %c0_3 = arith.constant 0 : index
    %c0_4 = arith.constant 0 : index
    %2 = vector.load %arg2[%c0_3, %c0_4] : memref<128x128xf32, #tpu.memory_space<vmem>>, vector<128x128xf32>
    %cst = arith.constant dense<0.000000e+00> : vector<8x128xf32>
    %3 = tpu.matmul %1, %2, %cst {dimension_numbers = #tpu.dot_dimension_numbers<[1], [0], [0], [1], [0, 0, 1, 1], [], []>} : vector<8x128xf32>, vector<128x128xf32>, vector<8x128xf32> -> vector<8x128xf32>
    %4 = vector.extract_strided_slice %0 {offsets = [0, 0], sizes = [1, 128], strides = [1, 1]} : vector<8x128xf32> to vector<1x128xf32>
    %5 = vector.broadcast %4 : vector<1x128xf32> to vector<8x128xf32>
    %6 = arith.addf %3, %5 : vector<8x128xf32>
    %cst_5 = arith.constant 0.000000e+00 : f32
    %7 = vector.broadcast %cst_5 : f32 to vector<8x128xf32>
    %8 = arith.maximumf %6, %7 : vector<8x128xf32>
    %c0_6 = arith.constant 0 : index
    %c0_7 = arith.constant 0 : index
    %9 = vector.load %arg3[%c0_6, %c0_7] : memref<128x128xf32, #tpu.memory_space<vmem>>, vector<128x128xf32>
    %cst_8 = arith.constant dense<0.000000e+00> : vector<8x128xf32>
    %10 = tpu.matmul %8, %9, %cst_8 {dimension_numbers = #tpu.dot_dimension_numbers<[1], [0], [0], [1], [0, 0, 1, 1], [], []>} : vector<8x128xf32>, vector<128x128xf32>, vector<8x128xf32> -> vector<8x128xf32>
    %11 = vector.extract_strided_slice %0 {offsets = [1, 0], sizes = [1, 128], strides = [1, 1]} : vector<8x128xf32> to vector<1x128xf32>
    %12 = vector.broadcast %11 : vector<1x128xf32> to vector<8x128xf32>
    %13 = arith.addf %10, %12 : vector<8x128xf32>
    %cst_9 = arith.constant 0.000000e+00 : f32
    %14 = vector.broadcast %cst_9 : f32 to vector<8x128xf32>
    %15 = arith.maximumf %13, %14 : vector<8x128xf32>
    %c0_10 = arith.constant 0 : index
    %c0_11 = arith.constant 0 : index
    %16 = vector.load %arg4[%c0_10, %c0_11] : memref<128x128xf32, #tpu.memory_space<vmem>>, vector<128x128xf32>
    %cst_12 = arith.constant dense<0.000000e+00> : vector<8x128xf32>
    %17 = tpu.matmul %15, %16, %cst_12 {dimension_numbers = #tpu.dot_dimension_numbers<[1], [0], [0], [1], [0, 0, 1, 1], [], []>} : vector<8x128xf32>, vector<128x128xf32>, vector<8x128xf32> -> vector<8x128xf32>
    %18 = vector.extract_strided_slice %0 {offsets = [2, 0], sizes = [1, 128], strides = [1, 1]} : vector<8x128xf32> to vector<1x128xf32>
    %19 = vector.broadcast %18 : vector<1x128xf32> to vector<8x128xf32>
    %20 = arith.addf %17, %19 : vector<8x128xf32>
    %cst_13 = arith.constant 0.000000e+00 : f32
    %21 = vector.broadcast %cst_13 : f32 to vector<8x128xf32>
    %22 = arith.maximumf %20, %21 : vector<8x128xf32>
    %c0_14 = arith.constant 0 : index
    %c0_15 = arith.constant 0 : index
    %23 = vector.load %arg5[%c0_14, %c0_15] : memref<128x128xf32, #tpu.memory_space<vmem>>, vector<128x128xf32>
    %cst_16 = arith.constant dense<0.000000e+00> : vector<8x128xf32>
    %24 = tpu.matmul %22, %23, %cst_16 {dimension_numbers = #tpu.dot_dimension_numbers<[1], [0], [0], [1], [0, 0, 1, 1], [], []>} : vector<8x128xf32>, vector<128x128xf32>, vector<8x128xf32> -> vector<8x128xf32>
    %25 = vector.extract_strided_slice %0 {offsets = [3, 0], sizes = [1, 128], strides = [1, 1]} : vector<8x128xf32> to vector<1x128xf32>
    %26 = vector.broadcast %25 : vector<1x128xf32> to vector<8x128xf32>
    %27 = arith.addf %24, %26 : vector<8x128xf32>
    %c0_17 = arith.constant 0 : index
    %c0_18 = arith.constant 0 : index
    %28 = vector.load %arg6[%c0_17, %c0_18] : memref<128x128xf32, #tpu.memory_space<vmem>>, vector<128x128xf32>
    %cst_19 = arith.constant dense<0.000000e+00> : vector<8x128xf32>
    %29 = tpu.matmul %27, %28, %cst_19 {dimension_numbers = #tpu.dot_dimension_numbers<[1], [0], [0], [1], [0, 0, 1, 1], [], []>} : vector<8x128xf32>, vector<128x128xf32>, vector<8x128xf32> -> vector<8x128xf32>
    %30 = vector.extract_strided_slice %0 {offsets = [4, 0], sizes = [1, 128], strides = [1, 1]} : vector<8x128xf32> to vector<1x128xf32>
    %31 = vector.broadcast %30 : vector<1x128xf32> to vector<8x128xf32>
    %32 = arith.addf %29, %31 : vector<8x128xf32>
    %cst_20 = arith.constant 0.000000e+00 : f32
    %33 = vector.broadcast %cst_20 : f32 to vector<8x128xf32>
    %34 = arith.maximumf %32, %33 : vector<8x128xf32>
    %c0_21 = arith.constant 0 : index
    %c0_22 = arith.constant 0 : index
    %35 = vector.load %arg7[%c0_21, %c0_22] : memref<128x128xf32, #tpu.memory_space<vmem>>, vector<128x128xf32>
    %cst_23 = arith.constant dense<0.000000e+00> : vector<8x128xf32>
    %36 = tpu.matmul %34, %35, %cst_23 {dimension_numbers = #tpu.dot_dimension_numbers<[1], [0], [0], [1], [0, 0, 1, 1], [], []>} : vector<8x128xf32>, vector<128x128xf32>, vector<8x128xf32> -> vector<8x128xf32>
    %37 = vector.extract_strided_slice %0 {offsets = [5, 0], sizes = [1, 128], strides = [1, 1]} : vector<8x128xf32> to vector<1x128xf32>
    %38 = vector.broadcast %37 : vector<1x128xf32> to vector<8x128xf32>
    %39 = arith.addf %36, %38 : vector<8x128xf32>
    %cst_24 = arith.constant 0.000000e+00 : f32
    %40 = vector.broadcast %cst_24 : f32 to vector<8x128xf32>
    %41 = arith.maximumf %39, %40 : vector<8x128xf32>
    %c0_25 = arith.constant 0 : index
    %c0_26 = arith.constant 0 : index
    %42 = vector.load %arg8[%c0_25, %c0_26] : memref<128x128xf32, #tpu.memory_space<vmem>>, vector<128x128xf32>
    %cst_27 = arith.constant dense<0.000000e+00> : vector<8x128xf32>
    %43 = tpu.matmul %41, %42, %cst_27 {dimension_numbers = #tpu.dot_dimension_numbers<[1], [0], [0], [1], [0, 0, 1, 1], [], []>} : vector<8x128xf32>, vector<128x128xf32>, vector<8x128xf32> -> vector<8x128xf32>
    %44 = vector.extract_strided_slice %0 {offsets = [6, 0], sizes = [1, 128], strides = [1, 1]} : vector<8x128xf32> to vector<1x128xf32>
    %45 = vector.broadcast %44 : vector<1x128xf32> to vector<8x128xf32>
    %46 = arith.addf %43, %45 : vector<8x128xf32>
    %cst_28 = arith.constant 0.000000e+00 : f32
    %47 = vector.broadcast %cst_28 : f32 to vector<8x128xf32>
    %48 = arith.maximumf %46, %47 : vector<8x128xf32>
    %c0_29 = arith.constant 0 : index
    %c0_30 = arith.constant 0 : index
    %49 = vector.load %arg9[%c0_29, %c0_30] : memref<128x128xf32, #tpu.memory_space<vmem>>, vector<128x128xf32>
    %cst_31 = arith.constant dense<0.000000e+00> : vector<8x128xf32>
    %50 = tpu.matmul %48, %49, %cst_31 {dimension_numbers = #tpu.dot_dimension_numbers<[1], [0], [0], [1], [0, 0, 1, 1], [], []>} : vector<8x128xf32>, vector<128x128xf32>, vector<8x128xf32> -> vector<8x128xf32>
    %51 = vector.extract_strided_slice %0 {offsets = [7, 0], sizes = [1, 128], strides = [1, 1]} : vector<8x128xf32> to vector<1x128xf32>
    %52 = vector.broadcast %51 : vector<1x128xf32> to vector<8x128xf32>
    %53 = arith.addf %50, %52 : vector<8x128xf32>
    %c0_32 = arith.constant 0 : index
    %c0_33 = arith.constant 0 : index
    %54 = vector.load %arg11[%c0_32, %c0_33] : memref<8x128xf32, #tpu.memory_space<vmem>>, vector<8x128xf32>
    tpu.vector_store %arg11[%c0_32, %c0_33], %53 {strides = array<i32>} : memref<8x128xf32, #tpu.memory_space<vmem>>, vector<8x128xf32>,
    return
  }
  func.func @transform_0(%arg0: i32) -> (i32, i32) {
    %c0_i32 = arith.constant 0 : i32
    %c0_i32_0 = arith.constant 0 : i32
    return %arg0, %c0_i32 : i32, i32
  }
  func.func @transform_1(%arg0: i32) -> (i32, i32) {
    %c0_i32 = arith.constant 0 : i32
    %c0_i32_0 = arith.constant 0 : i32
    %c0_i32_1 = arith.constant 0 : i32
    return %c0_i32, %c0_i32_0 : i32, i32
  }
  func.func @transform_2(%arg0: i32) -> (i32, i32) {
    %c0_i32 = arith.constant 0 : i32
    %c0_i32_0 = arith.constant 0 : i32
    %c0_i32_1 = arith.constant 0 : i32
    return %c0_i32, %c0_i32_0 : i32, i32
  }
  func.func @transform_3(%arg0: i32) -> (i32, i32) {
    %c0_i32 = arith.constant 0 : i32
    %c0_i32_0 = arith.constant 0 : i32
    %c0_i32_1 = arith.constant 0 : i32
    return %c0_i32, %c0_i32_0 : i32, i32
  }
  func.func @transform_4(%arg0: i32) -> (i32, i32) {
    %c0_i32 = arith.constant 0 : i32
    %c0_i32_0 = arith.constant 0 : i32
    %c0_i32_1 = arith.constant 0 : i32
    return %c0_i32, %c0_i32_0 : i32, i32
  }
  func.func @transform_5(%arg0: i32) -> (i32, i32) {
    %c0_i32 = arith.constant 0 : i32
    %c0_i32_0 = arith.constant 0 : i32
    %c0_i32_1 = arith.constant 0 : i32
    return %c0_i32, %c0_i32_0 : i32, i32
  }
  func.func @transform_6(%arg0: i32) -> (i32, i32) {
    %c0_i32 = arith.constant 0 : i32
    %c0_i32_0 = arith.constant 0 : i32
    %c0_i32_1 = arith.constant 0 : i32
    return %c0_i32, %c0_i32_0 : i32, i32
  }
  func.func @transform_7(%arg0: i32) -> (i32, i32) {
    %c0_i32 = arith.constant 0 : i32
    %c0_i32_0 = arith.constant 0 : i32
    %c0_i32_1 = arith.constant 0 : i32
    return %c0_i32, %c0_i32_0 : i32, i32
  }
  func.func @transform_8(%arg0: i32) -> (i32, i32) {
    %c0_i32 = arith.constant 0 : i32
    %c0_i32_0 = arith.constant 0 : i32
    %c0_i32_1 = arith.constant 0 : i32
    return %c0_i32, %c0_i32_0 : i32, i32
  }
  func.func @transform_9(%arg0: i32) -> (i32, i32) {
    %c0_i32 = arith.constant 0 : i32
    %c0_i32_0 = arith.constant 0 : i32
    %c0_i32_1 = arith.constant 0 : i32
    return %c0_i32, %c0_i32_0 : i32, i32
  }
  func.func @transform_10(%arg0: i32) -> (i32, i32) {
    %c0_i32 = arith.constant 0 : i32
    %c0_i32_0 = arith.constant 0 : i32
    return %arg0, %c0_i32 : i32, i32
  }
}

</mosaic_0001>

<llo_original>
// kernel: tpu_custom_call.1
$region0: #{tpu_custom_call.1}
  #allocation0 [shape = 'u32[]', space=smem, size = 0x4, offset = 0x4, fixed_abs, tag = 'smem constant byte address 0x4 - core index']
  #allocation1 [shape = 'u32[144,128]{1,0:T(1,128)}', space=vmem, size = 0x12000, scoped, tag = 'internal scratch']
  %s0 = inlined_call_operand.hbm [shape: f32[8,128], index: 0, kind: input, shape index: {}]
  %s1 = inlined_call_operand.hbm [shape: f32[128,128], index: 1, kind: input, shape index: {}]
  %s2 = inlined_call_operand.hbm [shape: f32[128,128], index: 2, kind: input, shape index: {}]
  %s3 = inlined_call_operand.hbm [shape: f32[128,128], index: 3, kind: input, shape index: {}]
  %s4 = inlined_call_operand.hbm [shape: f32[128,128], index: 4, kind: input, shape index: {}]
  %s5 = inlined_call_operand.hbm [shape: f32[128,128], index: 5, kind: input, shape index: {}]
  %s6 = inlined_call_operand.hbm [shape: f32[128,128], index: 6, kind: input, shape index: {}]
  %s7 = inlined_call_operand.hbm [shape: f32[128,128], index: 7, kind: input, shape index: {}]
  %s8 = inlined_call_operand.hbm [shape: f32[128,128], index: 8, kind: input, shape index: {}]
  %s9 = inlined_call_operand.vmem [shape: f32[8,128], index: 9, kind: input, shape index: {}]
  %s10 = inlined_call_operand.hbm [shape: f32[8,128], index: 10, kind: output, shape index: {}]
  %s11 = sld [smem:[#allocation0]]
  $region86: #{tpu_custom_call.1} parent=0
    _
  %s13 = ssub.s32 1, %s11
  %s14 = scalar_select 0, %s13, %s11
  $region1: #{tpu_custom_call.1} parent=0
    #allocation2 [shape = 'u8[4096]{0}', space=vmem, size = 0x1000, scoped, tag = 'input window, operand 0, single buffered']
    #allocation3 [shape = 's32[1]{0}', space=sflag, size = 0x4, scoped, tag = 'scoped memory for tpu_custom_call.1']
    #allocation4 [shape = 's32[1]{0}', space=sflag, size = 0x4, scoped, tag = 'scoped memory for tpu_custom_call.1']
    #allocation5 [shape = 'u8[65536]{0}', space=vmem, size = 0x10000, scoped, tag = 'input window, operand 1, single buffered']
    #allocation6 [shape = 's32[1]{0}', space=sflag, size = 0x4, scoped, tag = 'scoped memory for tpu_custom_call.1']
    #allocation7 [shape = 'u8[65536]{0}', space=vmem, size = 0x10000, scoped, tag = 'input window, operand 2, single buffered']
    #allocation8 [shape = 'u8[65536]{0}', space=vmem, size = 0x10000, scoped, tag = 'input window, operand 3, single buffered']
    #allocation9 [shape = 's32[1]{0}', space=sflag, size = 0x4, scoped, tag = 'scoped memory for tpu_custom_call.1']
    #allocation10 [shape = 'u8[65536]{0}', space=vmem, size = 0x10000, scoped, tag = 'input window, operand 4, single buffered']
    #allocation11 [shape = 'u8[65536]{0}', space=vmem, size = 0x10000, scoped, tag = 'input window, operand 5, single buffered']
    #allocation12 [shape = 's32[1]{0}', space=sflag, size = 0x4, scoped, tag = 'scoped memory for tpu_custom_call.1']
    #allocation13 [shape = 'u8[65536]{0}', space=vmem, size = 0x10000, scoped, tag = 'input window, operand 6, single buffered']
    #allocation14 [shape = 'u8[65536]{0}', space=vmem, size = 0x10000, scoped, tag = 'input window, operand 7, single buffered']
    #allocation15 [shape = 's32[1]{0}', space=sflag, size = 0x4, scoped, tag = 'scoped memory for tpu_custom_call.1']
    #allocation16 [shape = 'u8[65536]{0}', space=vmem, size = 0x10000, scoped, tag = 'input window, operand 8, single buffered']
    #allocation17 [shape = 'u8[4096]{0}', space=vmem, size = 0x1000, scoped, tag = 'output window, operand 0, single buffered']
    %15 = vsyncpa [#allocation3], 0
    %16 = vsyncpa [#allocation6], 0
    %17 = vsyncpa [#allocation9], 0
    %18 = vsyncpa [#allocation12], 0
    %19 = vsyncpa [#allocation15], 0
    %20 = vsyncpa [#allocation4], 0
    // Predicated region
    $region2: #{tpu_custom_call.1} parent=1 // pred_check
      _
    $region3: #{tpu_custom_call.1} parent=1 // pred_check_branch
      %22 = sbr.rel (0) target = $region5
    $region4: #{tpu_custom_call.1} parent=1 // pred_region
      %s24 = ssub.s32 128, 128
      %25 = vsyncadd [#allocation3], %s24
      %s27 = sshll.u32 [#allocation2], 4
      %s28 = int_to_ptr.vmem [resolvable:$true] %s27
      %30 = dma.hbm_to_vmem [thread:$0]  %s0, 128, %s28, [#allocation3]
    $region5: #{tpu_custom_call.1} parent=1 // pred_fallthru
      _
    // Predicated region
    $region6: #{tpu_custom_call.1} parent=1 // pred_check
      _
    $region7: #{tpu_custom_call.1} parent=1 // pred_check_branch
      %32 = sbr.rel (0) target = $region9
    $region8: #{tpu_custom_call.1} parent=1 // pred_region
      %s34 = ssub.s32 2048, 2048
      %35 = vsyncadd [#allocation6], %s34
      %s36 = sshll.u32 [#allocation5], 4
      %s37 = int_to_ptr.vmem [resolvable:$true] %s36
      %42 = dma.hbm_to_vmem [thread:$0]  %s1, 2048, %s37, [#allocation6], 128, 128, 8
    $region9: #{tpu_custom_call.1} parent=1 // pred_fallthru
      _
    // Predicated region
    $region10: #{tpu_custom_call.1} parent=1 // pred_check
      _
    $region11: #{tpu_custom_call.1} parent=1 // pred_check_branch
      %44 = sbr.rel (0) target = $region13
    $region12: #{tpu_custom_call.1} parent=1 // pred_region
      %s46 = ssub.s32 2048, 2048
      %47 = vsyncadd [#allocation6], %s46
      %s48 = sshll.u32 [#allocation7], 4
      %s49 = int_to_ptr.vmem [resolvable:$true] %s48
      %54 = dma.hbm_to_vmem [thread:$0]  %s2, 2048, %s49, [#allocation6], 128, 128, 8
    $region13: #{tpu_custom_call.1} parent=1 // pred_fallthru
      _
    // Predicated region
    $region14: #{tpu_custom_call.1} parent=1 // pred_check
      _
    $region15: #{tpu_custom_call.1} parent=1 // pred_check_branch
      %56 = sbr.rel (0) target = $region17
    $region16: #{tpu_custom_call.1} parent=1 // pred_region
      %s58 = ssub.s32 2048, 2048
      %59 = vsyncadd [#allocation9], %s58
      %s60 = sshll.u32 [#allocation8], 4
      %s61 = int_to_ptr.vmem [resolvable:$true] %s60
      %66 = dma.hbm_to_vmem [thread:$0]  %s3, 2048, %s61, [#allocation9], 128, 128, 8
    $region17: #{tpu_custom_call.1} parent=1 // pred_fallthru
      _
    // Predicated region
    $region18: #{tpu_custom_call.1} parent=1 // pred_check
      _
    $region19: #{tpu_custom_call.1} parent=1 // pred_check_branch
      %68 = sbr.rel (0) target = $region21
    $region20: #{tpu_custom_call.1} parent=1 // pred_region
      %s70 = ssub.s32 2048, 2048
      %71 = vsyncadd [#allocation9], %s70
      %s72 = sshll.u32 [#allocation10], 4
      %s73 = int_to_ptr.vmem [resolvable:$true] %s72
      %78 = dma.hbm_to_vmem [thread:$0]  %s4, 2048, %s73, [#allocation9], 128, 128, 8
    $region21: #{tpu_custom_call.1} parent=1 // pred_fallthru
      _
    // Predicated region
    $region22: #{tpu_custom_call.1} parent=1 // pred_check
      _
    $region23: #{tpu_custom_call.1} parent=1 // pred_check_branch
      %80 = sbr.rel (0) target = $region25
    $region24: #{tpu_custom_call.1} parent=1 // pred_region
      %s82 = ssub.s32 2048, 2048
      %83 = vsyncadd [#allocation12], %s82
      %s84 = sshll.u32 [#allocation11], 4
      %s85 = int_to_ptr.vmem [resolvable:$true] %s84
      %90 = dma.hbm_to_vmem [thread:$0]  %s5, 2048, %s85, [#allocation12], 128, 128, 8
    $region25: #{tpu_custom_call.1} parent=1 // pred_fallthru
      _
    // Predicated region
    $region26: #{tpu_custom_call.1} parent=1 // pred_check
      _
    $region27: #{tpu_custom_call.1} parent=1 // pred_check_branch
      %92 = sbr.rel (0) target = $region29
    $region28: #{tpu_custom_call.1} parent=1 // pred_region
      %s94 = ssub.s32 2048, 2048
      %95 = vsyncadd [#allocation12], %s94
      %s96 = sshll.u32 [#allocation13], 4
      %s97 = int_to_ptr.vmem [resolvable:$true] %s96
      %102 = dma.hbm_to_vmem [thread:$0]  %s6, 2048, %s97, [#allocation12], 128, 128, 8
    $region29: #{tpu_custom_call.1} parent=1 // pred_fallthru
      _
    // Predicated region
    $region30: #{tpu_custom_call.1} parent=1 // pred_check
      _
    $region31: #{tpu_custom_call.1} parent=1 // pred_check_branch
      %104 = sbr.rel (0) target = $region33
    $region32: #{tpu_custom_call.1} parent=1 // pred_region
      %s106 = ssub.s32 2048, 2048
      %107 = vsyncadd [#allocation15], %s106
      %s108 = sshll.u32 [#allocation14], 4
      %s109 = int_to_ptr.vmem [resolvable:$true] %s108
      %114 = dma.hbm_to_vmem [thread:$0]  %s7, 2048, %s109, [#allocation15], 128, 128, 8
    $region33: #{tpu_custom_call.1} parent=1 // pred_fallthru
      _
    // Predicated region
    $region34: #{tpu_custom_call.1} parent=1 // pred_check
      _
    $region35: #{tpu_custom_call.1} parent=1 // pred_check_branch
      %116 = sbr.rel (0) target = $region37
    $region36: #{tpu_custom_call.1} parent=1 // pred_region
      %s118 = ssub.s32 2048, 2048
      %119 = vsyncadd [#allocation15], %s118
      %s120 = sshll.u32 [#allocation16], 4
      %s121 = int_to_ptr.vmem [resolvable:$true] %s120
      %126 = dma.hbm_to_vmem [thread:$0]  %s8, 2048, %s121, [#allocation15], 128, 128, 8
    $region37: #{tpu_custom_call.1} parent=1 // pred_fallthru
      _
    // Predicated region
    $region38: #{tpu_custom_call.1} parent=1 // pred_check
      _
    $region39: #{tpu_custom_call.1} parent=1 // pred_check_branch
      %128 = sbr.rel (0) target = $region41
    $region40: #{tpu_custom_call.1} parent=1 // pred_region
      _
    $region41: #{tpu_custom_call.1} parent=1 // pred_fallthru
      _
    // Predicated region
    $region42: #{tpu_custom_call.1} parent=1 // pred_check
      _
    $region43: #{tpu_custom_call.1} parent=1 // pred_check_branch
      %130 = sbr.rel (0) target = $region45
    $region44: #{tpu_custom_call.1} parent=1 // pred_region
      %131 = dma.done [#allocation3], 128
    $region45: #{tpu_custom_call.1} parent=1 // pred_fallthru
      _
    // Predicated region
    $region46: #{tpu_custom_call.1} parent=1 // pred_check
      _
    $region47: #{tpu_custom_call.1} parent=1 // pred_check_branch
      %133 = sbr.rel (0) target = $region49
    $region48: #{tpu_custom_call.1} parent=1 // pred_region
      %134 = dma.done [#allocation6], 2048
    $region49: #{tpu_custom_call.1} parent=1 // pred_fallthru
      _
    // Predicated region
    $region50: #{tpu_custom_call.1} parent=1 // pred_check
      _
    $region51: #{tpu_custom_call.1} parent=1 // pred_check_branch
      %136 = sbr.rel (0) target = $region53
    $region52: #{tpu_custom_call.1} parent=1 // pred_region
      %137 = dma.done [#allocation6], 2048
    $region53: #{tpu_custom_call.1} parent=1 // pred_fallthru
      _
    // Predicated region
    $region54: #{tpu_custom_call.1} parent=1 // pred_check
      _
    $region55: #{tpu_custom_call.1} parent=1 // pred_check_branch
      %139 = sbr.rel (0) target = $region57
    $region56: #{tpu_custom_call.1} parent=1 // pred_region
      %140 = dma.done [#allocation9], 2048
    $region57: #{tpu_custom_call.1} parent=1 // pred_fallthru
      _
    // Predicated region
    $region58: #{tpu_custom_call.1} parent=1 // pred_check
      _
    $region59: #{tpu_custom_call.1} parent=1 // pred_check_branch
      %142 = sbr.rel (0) target = $region61
    $region60: #{tpu_custom_call.1} parent=1 // pred_region
      %143 = dma.done [#allocation9], 2048
    $region61: #{tpu_custom_call.1} parent=1 // pred_fallthru
      _
    // Predicated region
    $region62: #{tpu_custom_call.1} parent=1 // pred_check
      _
    $region63: #{tpu_custom_call.1} parent=1 // pred_check_branch
      %145 = sbr.rel (0) target = $region65
    $region64: #{tpu_custom_call.1} parent=1 // pred_region
      %146 = dma.done [#allocation12], 2048
    $region65: #{tpu_custom_call.1} parent=1 // pred_fallthru
      _
    // Predicated region
    $region66: #{tpu_custom_call.1} parent=1 // pred_check
      _
    $region67: #{tpu_custom_call.1} parent=1 // pred_check_branch
      %148 = sbr.rel (0) target = $region69
    $region68: #{tpu_custom_call.1} parent=1 // pred_region
      %149 = dma.done [#allocation12], 2048
    $region69: #{tpu_custom_call.1} parent=1 // pred_fallthru
      _
    // Predicated region
    $region70: #{tpu_custom_call.1} parent=1 // pred_check
      _
    $region71: #{tpu_custom_call.1} parent=1 // pred_check_branch
      %151 = sbr.rel (0) target = $region73
    $region72: #{tpu_custom_call.1} parent=1 // pred_region
      %152 = dma.done [#allocation15], 2048
    $region73: #{tpu_custom_call.1} parent=1 // pred_fallthru
      _
    // Predicated region
    $region74: #{tpu_custom_call.1} parent=1 // pred_check
      _
    $region75: #{tpu_custom_call.1} parent=1 // pred_check_branch
      %154 = sbr.rel (0) target = $region77
    $region76: #{tpu_custom_call.1} parent=1 // pred_region
      %155 = dma.done [#allocation15], 2048
    $region77: #{tpu_custom_call.1} parent=1 // pred_fallthru
      _
    %v156 = vld [vmem:[%s9] sm:$0xff]
    %v157 = vld [vmem:[#allocation2] sm:$0xff]
    %v158 = vld [vmem:[#allocation5] sm:$0xff]
    %v159 = vld [vmem:[#allocation5 + $0x8] sm:$0xff]
    %v160 = vld [vmem:[#allocation5 + $0x10] sm:$0xff]
    %v161 = vld [vmem:[#allocation5 + $0x18] sm:$0xff]
    %v162 = vld [vmem:[#allocation5 + $0x20] sm:$0xff]
    %v163 = vld [vmem:[#allocation5 + $0x28] sm:$0xff]
    %v164 = vld [vmem:[#allocation5 + $0x30] sm:$0xff]
    %v165 = vld [vmem:[#allocation5 + $0x38] sm:$0xff]
    %v166 = vld [vmem:[#allocation5 + $0x40] sm:$0xff]
    %v167 = vld [vmem:[#allocation5 + $0x48] sm:$0xff]
    %v168 = vld [vmem:[#allocation5 + $0x50] sm:$0xff]
    %v169 = vld [vmem:[#allocation5 + $0x58] sm:$0xff]
    %v170 = vld [vmem:[#allocation5 + $0x60] sm:$0xff]
    %v171 = vld [vmem:[#allocation5 + $0x68] sm:$0xff]
    %v172 = vld [vmem:[#allocation5 + $0x70] sm:$0xff]
    %v173 = vld [vmem:[#allocation5 + $0x78] sm:$0xff]
    %v174 = vlaneseq
    %v175 = vshrl.u32 %v174, 7
    %v176 = vsub.s32 0, %v175
    %v177 = vrot.slane %v156, %v176
    %178 = vmatprep.subr.mxu0 0.0
    %179 = vmatpush1.msra.mxu0 %v173
    %180 = vmatprep.subr.mxu0 0.0
    %181 = vmatpush1.msra.mxu0 %v172
    %182 = vmatprep.subr.mxu0 0.0
    %183 = vmatpush1.msra.mxu0 %v171
    %184 = vmatprep.subr.mxu0 0.0
    %185 = vmatpush1.msra.mxu0 %v170
    %186 = vmatprep.subr.mxu0 0.0
    %187 = vmatpush1.msra.mxu0 %v169
    %188 = vmatprep.subr.mxu0 0.0
    %189 = vmatpush1.msra.mxu0 %v168
    %190 = vmatprep.subr.mxu0 0.0
    %191 = vmatpush1.msra.mxu0 %v167
    %192 = vmatprep.subr.mxu0 0.0
    %193 = vmatpush1.msra.mxu0 %v166
    %194 = vmatprep.subr.mxu0 0.0
    %195 = vmatpush1.msra.mxu0 %v165
    %196 = vmatprep.subr.mxu0 0.0
    %197 = vmatpush1.msra.mxu0 %v164
    %198 = vmatprep.subr.mxu0 0.0
    %199 = vmatpush1.msra.mxu0 %v163
    %200 = vmatprep.subr.mxu0 0.0
    %201 = vmatpush1.msra.mxu0 %v162
    %202 = vmatprep.subr.mxu0 0.0
    %203 = vmatpush1.msra.mxu0 %v161
    %204 = vmatprep.subr.mxu0 0.0
    %205 = vmatpush1.msra.mxu0 %v160
    %206 = vmatprep.subr.mxu0 0.0
    %207 = vmatpush1.msra.mxu0 %v159
    %208 = vmatprep.subr.mxu0 0.0
    %209 = vmatpush1.msra.mxu0 %v158
    %210 = vmatprep.subr.mxu0 0.0
    %211 = vmatpush2.msra.mxu0 0.0
    %212 = vmatprep.subr.mxu0 0.0
    %213 = vmatpush2.msra.mxu0 0.0
    %214 = vmatprep.subr.mxu0 0.0
    %215 = vmatpush2.msra.mxu0 0.0
    %216 = vmatprep.subr.mxu0 0.0
    %217 = vmatpush2.msra.mxu0 0.0
    %218 = vmatprep.subr.mxu0 0.0
    %219 = vmatpush2.msra.mxu0 0.0
    %220 = vmatprep.subr.mxu0 0.0
    %221 = vmatpush2.msra.mxu0 0.0
    %222 = vmatprep.subr.mxu0 0.0
    %223 = vmatpush2.msra.mxu0 0.0
    %224 = vmatprep.subr.mxu0 0.0
    %225 = vmatpush2.msra.mxu0 0.0
    %226 = vmatprep.subr.mxu0 0.0
    %227 = vmatpush2.msra.mxu0 0.0
    %228 = vmatprep.subr.mxu0 0.0
    %229 = vmatpush2.msra.mxu0 0.0
    %230 = vmatprep.subr.mxu0 0.0
    %231 = vmatpush2.msra.mxu0 0.0
    %232 = vmatprep.subr.mxu0 0.0
    %233 = vmatpush2.msra.mxu0 0.0
    %234 = vmatprep.subr.mxu0 0.0
    %235 = vmatpush2.msra.mxu0 0.0
    %236 = vmatprep.subr.mxu0 0.0
    %237 = vmatpush2.msra.mxu0 0.0
    %238 = vmatprep.subr.mxu0 0.0
    %239 = vmatpush2.msra.mxu0 0.0
    %240 = vmatprep.subr.mxu0 0.0
    %241 = vmatpush2.msra.mxu0 0.0
    %242 = vmatprep.mubr.f32.mxu0 0.0
    %243 = vmatmul.mubr.f32.gmra.mxu0 %v157
    %v244 = vpop.f32.mrf.mxu0
    %v245 = vadd.f32 %v177, %v244
    %v246 = vpop.f32.mrf.mxu0
    %247 = vdwg.mxu0
    %v248 = vmax.f32 %v245, 0.0
    %v249 = vld [vmem:[#allocation7] sm:$0xff]
    %v250 = vld [vmem:[#allocation7 + $0x8] sm:$0xff]
    %v251 = vld [vmem:[#allocation7 + $0x10] sm:$0xff]
    %v252 = vld [vmem:[#allocation7 + $0x18] sm:$0xff]
    %v253 = vld [vmem:[#allocation7 + $0x20] sm:$0xff]
    %v254 = vld [vmem:[#allocation7 + $0x28] sm:$0xff]
    %v255 = vld [vmem:[#allocation7 + $0x30] sm:$0xff]
    %v256 = vld [vmem:[#allocation7 + $0x38] sm:$0xff]
    %v257 = vld [vmem:[#allocation7 + $0x40] sm:$0xff]
    %v258 = vld [vmem:[#allocation7 + $0x48] sm:$0xff]
    %v259 = vld [vmem:[#allocation7 + $0x50] sm:$0xff]
    %v260 = vld [vmem:[#allocation7 + $0x58] sm:$0xff]
    %v261 = vld [vmem:[#allocation7 + $0x60] sm:$0xff]
    %v262 = vld [vmem:[#allocation7 + $0x68] sm:$0xff]
    %v263 = vld [vmem:[#allocation7 + $0x70] sm:$0xff]
    %v264 = vld [vmem:[#allocation7 + $0x78] sm:$0xff]
    %v265 = vlaneseq
    %v266 = vshrl.u32 %v265, 7
    %v267 = vsub.s32 1, %v266
    %v268 = vrot.slane %v156, %v267
    %269 = vmatprep.subr.mxu0 0.0
    %270 = vmatpush1.msra.mxu0 %v264
    %271 = vmatprep.subr.mxu0 0.0
    %272 = vmatpush1.msra.mxu0 %v263
    %273 = vmatprep.subr.mxu0 0.0
    %274 = vmatpush1.msra.mxu0 %v262
    %275 = vmatprep.subr.mxu0 0.0
    %276 = vmatpush1.msra.mxu0 %v261
    %277 = vmatprep.subr.mxu0 0.0
    %278 = vmatpush1.msra.mxu0 %v260
    %279 = vmatprep.subr.mxu0 0.0
    %280 = vmatpush1.msra.mxu0 %v259
    %281 = vmatprep.subr.mxu0 0.0
    %282 = vmatpush1.msra.mxu0 %v258
    %283 = vmatprep.subr.mxu0 0.0
    %284 = vmatpush1.msra.mxu0 %v257
    %285 = vmatprep.subr.mxu0 0.0
    %286 = vmatpush1.msra.mxu0 %v256
    %287 = vmatprep.subr.mxu0 0.0
    %288 = vmatpush1.msra.mxu0 %v255
    %289 = vmatprep.subr.mxu0 0.0
    %290 = vmatpush1.msra.mxu0 %v254
    %291 = vmatprep.subr.mxu0 0.0
    %292 = vmatpush1.msra.mxu0 %v253
    %293 = vmatprep.subr.mxu0 0.0
    %294 = vmatpush1.msra.mxu0 %v252
    %295 = vmatprep.subr.mxu0 0.0
    %296 = vmatpush1.msra.mxu0 %v251
    %297 = vmatprep.subr.mxu0 0.0
    %298 = vmatpush1.msra.mxu0 %v250
    %299 = vmatprep.subr.mxu0 0.0
    %300 = vmatpush1.msra.mxu0 %v249
    %301 = vmatprep.subr.mxu0 0.0
    %302 = vmatpush2.msra.mxu0 0.0
    %303 = vmatprep.subr.mxu0 0.0
    %304 = vmatpush2.msra.mxu0 0.0
    %305 = vmatprep.subr.mxu0 0.0
    %306 = vmatpush2.msra.mxu0 0.0
    %307 = vmatprep.subr.mxu0 0.0
    %308 = vmatpush2.msra.mxu0 0.0
    %309 = vmatprep.subr.mxu0 0.0
    %310 = vmatpush2.msra.mxu0 0.0
    %311 = vmatprep.subr.mxu0 0.0
    %312 = vmatpush2.msra.mxu0 0.0
    %313 = vmatprep.subr.mxu0 0.0
    %314 = vmatpush2.msra.mxu0 0.0
    %315 = vmatprep.subr.mxu0 0.0
    %316 = vmatpush2.msra.mxu0 0.0
    %317 = vmatprep.subr.mxu0 0.0
    %318 = vmatpush2.msra.mxu0 0.0
    %319 = vmatprep.subr.mxu0 0.0
    %320 = vmatpush2.msra.mxu0 0.0
    %321 = vmatprep.subr.mxu0 0.0
    %322 = vmatpush2.msra.mxu0 0.0
    %323 = vmatprep.subr.mxu0 0.0
    %324 = vmatpush2.msra.mxu0 0.0
    %325 = vmatprep.subr.mxu0 0.0
    %326 = vmatpush2.msra.mxu0 0.0
    %327 = vmatprep.subr.mxu0 0.0
    %328 = vmatpush2.msra.mxu0 0.0
    %329 = vmatprep.subr.mxu0 0.0
    %330 = vmatpush2.msra.mxu0 0.0
    %331 = vmatprep.subr.mxu0 0.0
    %332 = vmatpush2.msra.mxu0 0.0
    %333 = vmatprep.mubr.f32.mxu0 0.0
    %334 = vmatmul.mubr.f32.gmra.mxu0 %v248
    %v335 = vpop.f32.mrf.mxu0
    %v336 = vadd.f32 %v268, %v335
    %v337 = vpop.f32.mrf.mxu0
    %338 = vdwg.mxu0
    %v339 = vmax.f32 %v336, 0.0
    %v340 = vld [vmem:[#allocation8] sm:$0xff]
    %v341 = vld [vmem:[#allocation8 + $0x8] sm:$0xff]
    %v342 = vld [vmem:[#allocation8 + $0x10] sm:$0xff]
    %v343 = vld [vmem:[#allocation8 + $0x18] sm:$0xff]
    %v344 = vld [vmem:[#allocation8 + $0x20] sm:$0xff]
    %v345 = vld [vmem:[#allocation8 + $0x28] sm:$0xff]
    %v346 = vld [vmem:[#allocation8 + $0x30] sm:$0xff]
    %v347 = vld [vmem:[#allocation8 + $0x38] sm:$0xff]
    %v348 = vld [vmem:[#allocation8 + $0x40] sm:$0xff]
    %v349 = vld [vmem:[#allocation8 + $0x48] sm:$0xff]
    %v350 = vld [vmem:[#allocation8 + $0x50] sm:$0xff]
    %v351 = vld [vmem:[#allocation8 + $0x58] sm:$0xff]
    %v352 = vld [vmem:[#allocation8 + $0x60] sm:$0xff]
    %v353 = vld [vmem:[#allocation8 + $0x68] sm:$0xff]
    %v354 = vld [vmem:[#allocation8 + $0x70] sm:$0xff]
    %v355 = vld [vmem:[#allocation8 + $0x78] sm:$0xff]
    %v356 = vlaneseq
    %v357 = vshrl.u32 %v356, 7
    %v358 = vsub.s32 2, %v357
    %v359 = vrot.slane %v156, %v358
    %360 = vmatprep.subr.mxu0 0.0
    %361 = vmatpush1.msra.mxu0 %v355
    %362 = vmatprep.subr.mxu0 0.0
    %363 = vmatpush1.msra.mxu0 %v354
    %364 = vmatprep.subr.mxu0 0.0
    %365 = vmatpush1.msra.mxu0 %v353
    %366 = vmatprep.subr.mxu0 0.0
    %367 = vmatpush1.msra.mxu0 %v352
    %368 = vmatprep.subr.mxu0 0.0
    %369 = vmatpush1.msra.mxu0 %v351
    %370 = vmatprep.subr.mxu0 0.0
    %371 = vmatpush1.msra.mxu0 %v350
    %372 = vmatprep.subr.mxu0 0.0
    %373 = vmatpush1.msra.mxu0 %v349
    %374 = vmatprep.subr.mxu0 0.0
    %375 = vmatpush1.msra.mxu0 %v348
    %376 = vmatprep.subr.mxu0 0.0
    %377 = vmatpush1.msra.mxu0 %v347
    %378 = vmatprep.subr.mxu0 0.0
    %379 = vmatpush1.msra.mxu0 %v346
    %380 = vmatprep.subr.mxu0 0.0
    %381 = vmatpush1.msra.mxu0 %v345
    %382 = vmatprep.subr.mxu0 0.0
    %383 = vmatpush1.msra.mxu0 %v344
    %384 = vmatprep.subr.mxu0 0.0
    %385 = vmatpush1.msra.mxu0 %v343
    %386 = vmatprep.subr.mxu0 0.0
    %387 = vmatpush1.msra.mxu0 %v342
    %388 = vmatprep.subr.mxu0 0.0
    %389 = vmatpush1.msra.mxu0 %v341
    %390 = vmatprep.subr.mxu0 0.0
    %391 = vmatpush1.msra.mxu0 %v340
    %392 = vmatprep.subr.mxu0 0.0
    %393 = vmatpush2.msra.mxu0 0.0
    %394 = vmatprep.subr.mxu0 0.0
    %395 = vmatpush2.msra.mxu0 0.0
    %396 = vmatprep.subr.mxu0 0.0
    %397 = vmatpush2.msra.mxu0 0.0
    %398 = vmatprep.subr.mxu0 0.0
    %399 = vmatpush2.msra.mxu0 0.0
    %400 = vmatprep.subr.mxu0 0.0
    %401 = vmatpush2.msra.mxu0 0.0
    %402 = vmatprep.subr.mxu0 0.0
    %403 = vmatpush2.msra.mxu0 0.0
    %404 = vmatprep.subr.mxu0 0.0
    %405 = vmatpush2.msra.mxu0 0.0
    %406 = vmatprep.subr.mxu0 0.0
    %407 = vmatpush2.msra.mxu0 0.0
    %408 = vmatprep.subr.mxu0 0.0
    %409 = vmatpush2.msra.mxu0 0.0
    %410 = vmatprep.subr.mxu0 0.0
    %411 = vmatpush2.msra.mxu0 0.0
    %412 = vmatprep.subr.mxu0 0.0
    %413 = vmatpush2.msra.mxu0 0.0
    %414 = vmatprep.subr.mxu0 0.0
    %415 = vmatpush2.msra.mxu0 0.0
    %416 = vmatprep.subr.mxu0 0.0
    %417 = vmatpush2.msra.mxu0 0.0
    %418 = vmatprep.subr.mxu0 0.0
    %419 = vmatpush2.msra.mxu0 0.0
    %420 = vmatprep.subr.mxu0 0.0
    %421 = vmatpush2.msra.mxu0 0.0
    %422 = vmatprep.subr.mxu0 0.0
    %423 = vmatpush2.msra.mxu0 0.0
    %424 = vmatprep.mubr.f32.mxu0 0.0
    %425 = vmatmul.mubr.f32.gmra.mxu0 %v339
    %v426 = vpop.f32.mrf.mxu0
    %v427 = vadd.f32 %v359, %v426
    %v428 = vpop.f32.mrf.mxu0
    %429 = vdwg.mxu0
    %v430 = vmax.f32 %v427, 0.0
    %v431 = vld [vmem:[#allocation10] sm:$0xff]
    %v432 = vld [vmem:[#allocation10 + $0x8] sm:$0xff]
    %v433 = vld [vmem:[#allocation10 + $0x10] sm:$0xff]
    %v434 = vld [vmem:[#allocation10 + $0x18] sm:$0xff]
    %v435 = vld [vmem:[#allocation10 + $0x20] sm:$0xff]
    %v436 = vld [vmem:[#allocation10 + $0x28] sm:$0xff]
    %v437 = vld [vmem:[#allocation10 + $0x30] sm:$0xff]
    %v438 = vld [vmem:[#allocation10 + $0x38] sm:$0xff]
    %v439 = vld [vmem:[#allocation10 + $0x40] sm:$0xff]
    %v440 = vld [vmem:[#allocation10 + $0x48] sm:$0xff]
    %v441 = vld [vmem:[#allocation10 + $0x50] sm:$0xff]
    %v442 = vld [vmem:[#allocation10 + $0x58] sm:$0xff]
    %v443 = vld [vmem:[#allocation10 + $0x60] sm:$0xff]
    %v444 = vld [vmem:[#allocation10 + $0x68] sm:$0xff]
    %v445 = vld [vmem:[#allocation10 + $0x70] sm:$0xff]
    %v446 = vld [vmem:[#allocation10 + $0x78] sm:$0xff]
    %v447 = vlaneseq
    %v448 = vshrl.u32 %v447, 7
    %v449 = vsub.s32 3, %v448
    %v450 = vrot.slane %v156, %v449
    %451 = vmatprep.subr.mxu0 0.0
    %452 = vmatpush1.msra.mxu0 %v446
    %453 = vmatprep.subr.mxu0 0.0
    %454 = vmatpush1.msra.mxu0 %v445
    %455 = vmatprep.subr.mxu0 0.0
    %456 = vmatpush1.msra.mxu0 %v444
    %457 = vmatprep.subr.mxu0 0.0
    %458 = vmatpush1.msra.mxu0 %v443
    %459 = vmatprep.subr.mxu0 0.0
    %460 = vmatpush1.msra.mxu0 %v442
    %461 = vmatprep.subr.mxu0 0.0
    %462 = vmatpush1.msra.mxu0 %v441
    %463 = vmatprep.subr.mxu0 0.0
    %464 = vmatpush1.msra.mxu0 %v440
    %465 = vmatprep.subr.mxu0 0.0
    %466 = vmatpush1.msra.mxu0 %v439
    %467 = vmatprep.subr.mxu0 0.0
    %468 = vmatpush1.msra.mxu0 %v438
    %469 = vmatprep.subr.mxu0 0.0
    %470 = vmatpush1.msra.mxu0 %v437
    %471 = vmatprep.subr.mxu0 0.0
    %472 = vmatpush1.msra.mxu0 %v436
    %473 = vmatprep.subr.mxu0 0.0
    %474 = vmatpush1.msra.mxu0 %v435
    %475 = vmatprep.subr.mxu0 0.0
    %476 = vmatpush1.msra.mxu0 %v434
    %477 = vmatprep.subr.mxu0 0.0
    %478 = vmatpush1.msra.mxu0 %v433
    %479 = vmatprep.subr.mxu0 0.0
    %480 = vmatpush1.msra.mxu0 %v432
    %481 = vmatprep.subr.mxu0 0.0
    %482 = vmatpush1.msra.mxu0 %v431
    %483 = vmatprep.subr.mxu0 0.0
    %484 = vmatpush2.msra.mxu0 0.0
    %485 = vmatprep.subr.mxu0 0.0
    %486 = vmatpush2.msra.mxu0 0.0
    %487 = vmatprep.subr.mxu0 0.0
    %488 = vmatpush2.msra.mxu0 0.0
    %489 = vmatprep.subr.mxu0 0.0
    %490 = vmatpush2.msra.mxu0 0.0
    %491 = vmatprep.subr.mxu0 0.0
    %492 = vmatpush2.msra.mxu0 0.0
    %493 = vmatprep.subr.mxu0 0.0
    %494 = vmatpush2.msra.mxu0 0.0
    %495 = vmatprep.subr.mxu0 0.0
    %496 = vmatpush2.msra.mxu0 0.0
    %497 = vmatprep.subr.mxu0 0.0
    %498 = vmatpush2.msra.mxu0 0.0
    %499 = vmatprep.subr.mxu0 0.0
    %500 = vmatpush2.msra.mxu0 0.0
    %501 = vmatprep.subr.mxu0 0.0
    %502 = vmatpush2.msra.mxu0 0.0
    %503 = vmatprep.subr.mxu0 0.0
    %504 = vmatpush2.msra.mxu0 0.0
    %505 = vmatprep.subr.mxu0 0.0
    %506 = vmatpush2.msra.mxu0 0.0
    %507 = vmatprep.subr.mxu0 0.0
    %508 = vmatpush2.msra.mxu0 0.0
    %509 = vmatprep.subr.mxu0 0.0
    %510 = vmatpush2.msra.mxu0 0.0
    %511 = vmatprep.subr.mxu0 0.0
    %512 = vmatpush2.msra.mxu0 0.0
    %513 = vmatprep.subr.mxu0 0.0
    %514 = vmatpush2.msra.mxu0 0.0
    %515 = vmatprep.mubr.f32.mxu0 0.0
    %516 = vmatmul.mubr.f32.gmra.mxu0 %v430
    %v517 = vpop.f32.mrf.mxu0
    %v518 = vadd.f32 %v450, %v517
    %v519 = vpop.f32.mrf.mxu0
    %520 = vdwg.mxu0
    %v521 = vld [vmem:[#allocation11] sm:$0xff]
    %v522 = vld [vmem:[#allocation11 + $0x8] sm:$0xff]
    %v523 = vld [vmem:[#allocation11 + $0x10] sm:$0xff]
    %v524 = vld [vmem:[#allocation11 + $0x18] sm:$0xff]
    %v525 = vld [vmem:[#allocation11 + $0x20] sm:$0xff]
    %v526 = vld [vmem:[#allocation11 + $0x28] sm:$0xff]
    %v527 = vld [vmem:[#allocation11 + $0x30] sm:$0xff]
    %v528 = vld [vmem:[#allocation11 + $0x38] sm:$0xff]
    %v529 = vld [vmem:[#allocation11 + $0x40] sm:$0xff]
    %v530 = vld [vmem:[#allocation11 + $0x48] sm:$0xff]
    %v531 = vld [vmem:[#allocation11 + $0x50] sm:$0xff]
    %v532 = vld [vmem:[#allocation11 + $0x58] sm:$0xff]
    %v533 = vld [vmem:[#allocation11 + $0x60] sm:$0xff]
    %v534 = vld [vmem:[#allocation11 + $0x68] sm:$0xff]
    %v535 = vld [vmem:[#allocation11 + $0x70] sm:$0xff]
    %v536 = vld [vmem:[#allocation11 + $0x78] sm:$0xff]
    %v537 = vlaneseq
    %v538 = vshrl.u32 %v537, 7
    %v539 = vsub.s32 4, %v538
    %v540 = vrot.slane %v156, %v539
    %541 = vmatprep.subr.mxu0 0.0
    %542 = vmatpush1.msra.mxu0 %v536
    %543 = vmatprep.subr.mxu0 0.0
    %544 = vmatpush1.msra.mxu0 %v535
    %545 = vmatprep.subr.mxu0 0.0
    %546 = vmatpush1.msra.mxu0 %v534
    %547 = vmatprep.subr.mxu0 0.0
    %548 = vmatpush1.msra.mxu0 %v533
    %549 = vmatprep.subr.mxu0 0.0
    %550 = vmatpush1.msra.mxu0 %v532
    %551 = vmatprep.subr.mxu0 0.0
    %552 = vmatpush1.msra.mxu0 %v531
    %553 = vmatprep.subr.mxu0 0.0
    %554 = vmatpush1.msra.mxu0 %v530
    %555 = vmatprep.subr.mxu0 0.0
    %556 = vmatpush1.msra.mxu0 %v529
    %557 = vmatprep.subr.mxu0 0.0
    %558 = vmatpush1.msra.mxu0 %v528
    %559 = vmatprep.subr.mxu0 0.0
    %560 = vmatpush1.msra.mxu0 %v527
    %561 = vmatprep.subr.mxu0 0.0
    %562 = vmatpush1.msra.mxu0 %v526
    %563 = vmatprep.subr.mxu0 0.0
    %564 = vmatpush1.msra.mxu0 %v525
    %565 = vmatprep.subr.mxu0 0.0
    %566 = vmatpush1.msra.mxu0 %v524
    %567 = vmatprep.subr.mxu0 0.0
    %568 = vmatpush1.msra.mxu0 %v523
    %569 = vmatprep.subr.mxu0 0.0
    %570 = vmatpush1.msra.mxu0 %v522
    %571 = vmatprep.subr.mxu0 0.0
    %572 = vmatpush1.msra.mxu0 %v521
    %573 = vmatprep.subr.mxu0 0.0
    %574 = vmatpush2.msra.mxu0 0.0
    %575 = vmatprep.subr.mxu0 0.0
    %576 = vmatpush2.msra.mxu0 0.0
    %577 = vmatprep.subr.mxu0 0.0
    %578 = vmatpush2.msra.mxu0 0.0
    %579 = vmatprep.subr.mxu0 0.0
    %580 = vmatpush2.msra.mxu0 0.0
    %581 = vmatprep.subr.mxu0 0.0
    %582 = vmatpush2.msra.mxu0 0.0
    %583 = vmatprep.subr.mxu0 0.0
    %584 = vmatpush2.msra.mxu0 0.0
    %585 = vmatprep.subr.mxu0 0.0
    %586 = vmatpush2.msra.mxu0 0.0
    %587 = vmatprep.subr.mxu0 0.0
    %588 = vmatpush2.msra.mxu0 0.0
    %589 = vmatprep.subr.mxu0 0.0
    %590 = vmatpush2.msra.mxu0 0.0
    %591 = vmatprep.subr.mxu0 0.0
    %592 = vmatpush2.msra.mxu0 0.0
    %593 = vmatprep.subr.mxu0 0.0
    %594 = vmatpush2.msra.mxu0 0.0
    %595 = vmatprep.subr.mxu0 0.0
    %596 = vmatpush2.msra.mxu0 0.0
    %597 = vmatprep.subr.mxu0 0.0
    %598 = vmatpush2.msra.mxu0 0.0
    %599 = vmatprep.subr.mxu0 0.0
    %600 = vmatpush2.msra.mxu0 0.0
    %601 = vmatprep.subr.mxu0 0.0
    %602 = vmatpush2.msra.mxu0 0.0
    %603 = vmatprep.subr.mxu0 0.0
    %604 = vmatpush2.msra.mxu0 0.0
    %605 = vmatprep.mubr.f32.mxu0 0.0
    %606 = vmatmul.mubr.f32.gmra.mxu0 %v518
    %v607 = vpop.f32.mrf.mxu0
    %v608 = vadd.f32 %v540, %v607
    %v609 = vpop.f32.mrf.mxu0
    %610 = vdwg.mxu0
    %v611 = vmax.f32 %v608, 0.0
    %v612 = vld [vmem:[#allocation13] sm:$0xff]
    %v613 = vld [vmem:[#allocation13 + $0x8] sm:$0xff]
    %v614 = vld [vmem:[#allocation13 + $0x10] sm:$0xff]
    %v615 = vld [vmem:[#allocation13 + $0x18] sm:$0xff]
    %v616 = vld [vmem:[#allocation13 + $0x20] sm:$0xff]
    %v617 = vld [vmem:[#allocation13 + $0x28] sm:$0xff]
    %v618 = vld [vmem:[#allocation13 + $0x30] sm:$0xff]
    %v619 = vld [vmem:[#allocation13 + $0x38] sm:$0xff]
    %v620 = vld [vmem:[#allocation13 + $0x40] sm:$0xff]
    %v621 = vld [vmem:[#allocation13 + $0x48] sm:$0xff]
    %v622 = vld [vmem:[#allocation13 + $0x50] sm:$0xff]
    %v623 = vld [vmem:[#allocation13 + $0x58] sm:$0xff]
    %v624 = vld [vmem:[#allocation13 + $0x60] sm:$0xff]
    %v625 = vld [vmem:[#allocation13 + $0x68] sm:$0xff]
    %v626 = vld [vmem:[#allocation13 + $0x70] sm:$0xff]
    %v627 = vld [vmem:[#allocation13 + $0x78] sm:$0xff]
    %v628 = vlaneseq
    %v629 = vshrl.u32 %v628, 7
    %v630 = vsub.s32 5, %v629
    %v631 = vrot.slane %v156, %v630
    %632 = vmatprep.subr.mxu0 0.0
    %633 = vmatpush1.msra.mxu0 %v627
    %634 = vmatprep.subr.mxu0 0.0
    %635 = vmatpush1.msra.mxu0 %v626
    %636 = vmatprep.subr.mxu0 0.0
    %637 = vmatpush1.msra.mxu0 %v625
    %638 = vmatprep.subr.mxu0 0.0
    %639 = vmatpush1.msra.mxu0 %v624
    %640 = vmatprep.subr.mxu0 0.0
    %641 = vmatpush1.msra.mxu0 %v623
    %642 = vmatprep.subr.mxu0 0.0
    %643 = vmatpush1.msra.mxu0 %v622
    %644 = vmatprep.subr.mxu0 0.0
    %645 = vmatpush1.msra.mxu0 %v621
    %646 = vmatprep.subr.mxu0 0.0
    %647 = vmatpush1.msra.mxu0 %v620
    %648 = vmatprep.subr.mxu0 0.0
    %649 = vmatpush1.msra.mxu0 %v619
    %650 = vmatprep.subr.mxu0 0.0
    %651 = vmatpush1.msra.mxu0 %v618
    %652 = vmatprep.subr.mxu0 0.0
    %653 = vmatpush1.msra.mxu0 %v617
    %654 = vmatprep.subr.mxu0 0.0
    %655 = vmatpush1.msra.mxu0 %v616
    %656 = vmatprep.subr.mxu0 0.0
    %657 = vmatpush1.msra.mxu0 %v615
    %658 = vmatprep.subr.mxu0 0.0
    %659 = vmatpush1.msra.mxu0 %v614
    %660 = vmatprep.subr.mxu0 0.0
    %661 = vmatpush1.msra.mxu0 %v613
    %662 = vmatprep.subr.mxu0 0.0
    %663 = vmatpush1.msra.mxu0 %v612
    %664 = vmatprep.subr.mxu0 0.0
    %665 = vmatpush2.msra.mxu0 0.0
    %666 = vmatprep.subr.mxu0 0.0
    %667 = vmatpush2.msra.mxu0 0.0
    %668 = vmatprep.subr.mxu0 0.0
    %669 = vmatpush2.msra.mxu0 0.0
    %670 = vmatprep.subr.mxu0 0.0
    %671 = vmatpush2.msra.mxu0 0.0
    %672 = vmatprep.subr.mxu0 0.0
    %673 = vmatpush2.msra.mxu0 0.0
    %674 = vmatprep.subr.mxu0 0.0
    %675 = vmatpush2.msra.mxu0 0.0
    %676 = vmatprep.subr.mxu0 0.0
    %677 = vmatpush2.msra.mxu0 0.0
    %678 = vmatprep.subr.mxu0 0.0
    %679 = vmatpush2.msra.mxu0 0.0
    %680 = vmatprep.subr.mxu0 0.0
    %681 = vmatpush2.msra.mxu0 0.0
    %682 = vmatprep.subr.mxu0 0.0
    %683 = vmatpush2.msra.mxu0 0.0
    %684 = vmatprep.subr.mxu0 0.0
    %685 = vmatpush2.msra.mxu0 0.0
    %686 = vmatprep.subr.mxu0 0.0
    %687 = vmatpush2.msra.mxu0 0.0
    %688 = vmatprep.subr.mxu0 0.0
    %689 = vmatpush2.msra.mxu0 0.0
    %690 = vmatprep.subr.mxu0 0.0
    %691 = vmatpush2.msra.mxu0 0.0
    %692 = vmatprep.subr.mxu0 0.0
    %693 = vmatpush2.msra.mxu0 0.0
    %694 = vmatprep.subr.mxu0 0.0
    %695 = vmatpush2.msra.mxu0 0.0
    %696 = vmatprep.mubr.f32.mxu0 0.0
    %697 = vmatmul.mubr.f32.gmra.mxu0 %v611
    %v698 = vpop.f32.mrf.mxu0
    %v699 = vadd.f32 %v631, %v698
    %v700 = vpop.f32.mrf.mxu0
    %701 = vdwg.mxu0
    %v702 = vmax.f32 %v699, 0.0
    %v703 = vld [vmem:[#allocation14] sm:$0xff]
    %v704 = vld [vmem:[#allocation14 + $0x8] sm:$0xff]
    %v705 = vld [vmem:[#allocation14 + $0x10] sm:$0xff]
    %v706 = vld [vmem:[#allocation14 + $0x18] sm:$0xff]
    %v707 = vld [vmem:[#allocation14 + $0x20] sm:$0xff]
    %v708 = vld [vmem:[#allocation14 + $0x28] sm:$0xff]
    %v709 = vld [vmem:[#allocation14 + $0x30] sm:$0xff]
    %v710 = vld [vmem:[#allocation14 + $0x38] sm:$0xff]
    %v711 = vld [vmem:[#allocation14 + $0x40] sm:$0xff]
    %v712 = vld [vmem:[#allocation14 + $0x48] sm:$0xff]
    %v713 = vld [vmem:[#allocation14 + $0x50] sm:$0xff]
    %v714 = vld [vmem:[#allocation14 + $0x58] sm:$0xff]
    %v715 = vld [vmem:[#allocation14 + $0x60] sm:$0xff]
    %v716 = vld [vmem:[#allocation14 + $0x68] sm:$0xff]
    %v717 = vld [vmem:[#allocation14 + $0x70] sm:$0xff]
    %v718 = vld [vmem:[#allocation14 + $0x78] sm:$0xff]
    %v719 = vlaneseq
    %v720 = vshrl.u32 %v719, 7
    %v721 = vsub.s32 6, %v720
    %v722 = vrot.slane %v156, %v721
    %723 = vmatprep.subr.mxu0 0.0
    %724 = vmatpush1.msra.mxu0 %v718
    %725 = vmatprep.subr.mxu0 0.0
    %726 = vmatpush1.msra.mxu0 %v717
    %727 = vmatprep.subr.mxu0 0.0
    %728 = vmatpush1.msra.mxu0 %v716
    %729 = vmatprep.subr.mxu0 0.0
    %730 = vmatpush1.msra.mxu0 %v715
    %731 = vmatprep.subr.mxu0 0.0
    %732 = vmatpush1.msra.mxu0 %v714
    %733 = vmatprep.subr.mxu0 0.0
    %734 = vmatpush1.msra.mxu0 %v713
    %735 = vmatprep.subr.mxu0 0.0
    %736 = vmatpush1.msra.mxu0 %v712
    %737 = vmatprep.subr.mxu0 0.0
    %738 = vmatpush1.msra.mxu0 %v711
    %739 = vmatprep.subr.mxu0 0.0
    %740 = vmatpush1.msra.mxu0 %v710
    %741 = vmatprep.subr.mxu0 0.0
    %742 = vmatpush1.msra.mxu0 %v709
    %743 = vmatprep.subr.mxu0 0.0
    %744 = vmatpush1.msra.mxu0 %v708
    %745 = vmatprep.subr.mxu0 0.0
    %746 = vmatpush1.msra.mxu0 %v707
    %747 = vmatprep.subr.mxu0 0.0
    %748 = vmatpush1.msra.mxu0 %v706
    %749 = vmatprep.subr.mxu0 0.0
    %750 = vmatpush1.msra.mxu0 %v705
    %751 = vmatprep.subr.mxu0 0.0
    %752 = vmatpush1.msra.mxu0 %v704
    %753 = vmatprep.subr.mxu0 0.0
    %754 = vmatpush1.msra.mxu0 %v703
    %755 = vmatprep.subr.mxu0 0.0
    %756 = vmatpush2.msra.mxu0 0.0
    %757 = vmatprep.subr.mxu0 0.0
    %758 = vmatpush2.msra.mxu0 0.0
    %759 = vmatprep.subr.mxu0 0.0
    %760 = vmatpush2.msra.mxu0 0.0
    %761 = vmatprep.subr.mxu0 0.0
    %762 = vmatpush2.msra.mxu0 0.0
    %763 = vmatprep.subr.mxu0 0.0
    %764 = vmatpush2.msra.mxu0 0.0
    %765 = vmatprep.subr.mxu0 0.0
    %766 = vmatpush2.msra.mxu0 0.0
    %767 = vmatprep.subr.mxu0 0.0
    %768 = vmatpush2.msra.mxu0 0.0
    %769 = vmatprep.subr.mxu0 0.0
    %770 = vmatpush2.msra.mxu0 0.0
    %771 = vmatprep.subr.mxu0 0.0
    %772 = vmatpush2.msra.mxu0 0.0
    %773 = vmatprep.subr.mxu0 0.0
    %774 = vmatpush2.msra.mxu0 0.0
    %775 = vmatprep.subr.mxu0 0.0
    %776 = vmatpush2.msra.mxu0 0.0
    %777 = vmatprep.subr.mxu0 0.0
    %778 = vmatpush2.msra.mxu0 0.0
    %779 = vmatprep.subr.mxu0 0.0
    %780 = vmatpush2.msra.mxu0 0.0
    %781 = vmatprep.subr.mxu0 0.0
    %782 = vmatpush2.msra.mxu0 0.0
    %783 = vmatprep.subr.mxu0 0.0
    %784 = vmatpush2.msra.mxu0 0.0
    %785 = vmatprep.subr.mxu0 0.0
    %786 = vmatpush2.msra.mxu0 0.0
    %787 = vmatprep.mubr.f32.mxu0 0.0
    %788 = vmatmul.mubr.f32.gmra.mxu0 %v702
    %v789 = vpop.f32.mrf.mxu0
    %v790 = vadd.f32 %v722, %v789
    %v791 = vpop.f32.mrf.mxu0
    %792 = vdwg.mxu0
    %v793 = vmax.f32 %v790, 0.0
    %v794 = vld [vmem:[#allocation16] sm:$0xff]
    %v795 = vld [vmem:[#allocation16 + $0x8] sm:$0xff]
    %v796 = vld [vmem:[#allocation16 + $0x10] sm:$0xff]
    %v797 = vld [vmem:[#allocation16 + $0x18] sm:$0xff]
    %v798 = vld [vmem:[#allocation16 + $0x20] sm:$0xff]
    %v799 = vld [vmem:[#allocation16 + $0x28] sm:$0xff]
    %v800 = vld [vmem:[#allocation16 + $0x30] sm:$0xff]
    %v801 = vld [vmem:[#allocation16 + $0x38] sm:$0xff]
    %v802 = vld [vmem:[#allocation16 + $0x40] sm:$0xff]
    %v803 = vld [vmem:[#allocation16 + $0x48] sm:$0xff]
    %v804 = vld [vmem:[#allocation16 + $0x50] sm:$0xff]
    %v805 = vld [vmem:[#allocation16 + $0x58] sm:$0xff]
    %v806 = vld [vmem:[#allocation16 + $0x60] sm:$0xff]
    %v807 = vld [vmem:[#allocation16 + $0x68] sm:$0xff]
    %v808 = vld [vmem:[#allocation16 + $0x70] sm:$0xff]
    %v809 = vld [vmem:[#allocation16 + $0x78] sm:$0xff]
    %v810 = vlaneseq
    %v811 = vshrl.u32 %v810, 7
    %v812 = vsub.s32 7, %v811
    %v813 = vrot.slane %v156, %v812
    %814 = vmatprep.subr.mxu0 0.0
    %815 = vmatpush1.msra.mxu0 %v809
    %816 = vmatprep.subr.mxu0 0.0
    %817 = vmatpush1.msra.mxu0 %v808
    %818 = vmatprep.subr.mxu0 0.0
    %819 = vmatpush1.msra.mxu0 %v807
    %820 = vmatprep.subr.mxu0 0.0
    %821 = vmatpush1.msra.mxu0 %v806
    %822 = vmatprep.subr.mxu0 0.0
    %823 = vmatpush1.msra.mxu0 %v805
    %824 = vmatprep.subr.mxu0 0.0
    %825 = vmatpush1.msra.mxu0 %v804
    %826 = vmatprep.subr.mxu0 0.0
    %827 = vmatpush1.msra.mxu0 %v803
    %828 = vmatprep.subr.mxu0 0.0
    %829 = vmatpush1.msra.mxu0 %v802
    %830 = vmatprep.subr.mxu0 0.0
    %831 = vmatpush1.msra.mxu0 %v801
    %832 = vmatprep.subr.mxu0 0.0
    %833 = vmatpush1.msra.mxu0 %v800
    %834 = vmatprep.subr.mxu0 0.0
    %835 = vmatpush1.msra.mxu0 %v799
    %836 = vmatprep.subr.mxu0 0.0
    %837 = vmatpush1.msra.mxu0 %v798
    %838 = vmatprep.subr.mxu0 0.0
    %839 = vmatpush1.msra.mxu0 %v797
    %840 = vmatprep.subr.mxu0 0.0
    %841 = vmatpush1.msra.mxu0 %v796
    %842 = vmatprep.subr.mxu0 0.0
    %843 = vmatpush1.msra.mxu0 %v795
    %844 = vmatprep.subr.mxu0 0.0
    %845 = vmatpush1.msra.mxu0 %v794
    %846 = vmatprep.subr.mxu0 0.0
    %847 = vmatpush2.msra.mxu0 0.0
    %848 = vmatprep.subr.mxu0 0.0
    %849 = vmatpush2.msra.mxu0 0.0
    %850 = vmatprep.subr.mxu0 0.0
    %851 = vmatpush2.msra.mxu0 0.0
    %852 = vmatprep.subr.mxu0 0.0
    %853 = vmatpush2.msra.mxu0 0.0
    %854 = vmatprep.subr.mxu0 0.0
    %855 = vmatpush2.msra.mxu0 0.0
    %856 = vmatprep.subr.mxu0 0.0
    %857 = vmatpush2.msra.mxu0 0.0
    %858 = vmatprep.subr.mxu0 0.0
    %859 = vmatpush2.msra.mxu0 0.0
    %860 = vmatprep.subr.mxu0 0.0
    %861 = vmatpush2.msra.mxu0 0.0
    %862 = vmatprep.subr.mxu0 0.0
    %863 = vmatpush2.msra.mxu0 0.0
    %864 = vmatprep.subr.mxu0 0.0
    %865 = vmatpush2.msra.mxu0 0.0
    %866 = vmatprep.subr.mxu0 0.0
    %867 = vmatpush2.msra.mxu0 0.0
    %868 = vmatprep.subr.mxu0 0.0
    %869 = vmatpush2.msra.mxu0 0.0
    %870 = vmatprep.subr.mxu0 0.0
    %871 = vmatpush2.msra.mxu0 0.0
    %872 = vmatprep.subr.mxu0 0.0
    %873 = vmatpush2.msra.mxu0 0.0
    %874 = vmatprep.subr.mxu0 0.0
    %875 = vmatpush2.msra.mxu0 0.0
    %876 = vmatprep.subr.mxu0 0.0
    %877 = vmatpush2.msra.mxu0 0.0
    %878 = vmatprep.mubr.f32.mxu0 0.0
    %879 = vmatmul.mubr.f32.gmra.mxu0 %v793
    %v880 = vpop.f32.mrf.mxu0
    %v881 = vadd.f32 %v813, %v880
    %v882 = vpop.f32.mrf.mxu0
    %883 = vdwg.mxu0
    %884 = vst [vmem:[#allocation17] sm:$0xff] %v881
    // Predicated region
    $region78: #{tpu_custom_call.1} parent=1 // pred_check
      _
    $region79: #{tpu_custom_call.1} parent=1 // pred_check_branch
      %886 = sbr.rel (0) target = $region81
    $region80: #{tpu_custom_call.1} parent=1 // pred_region
      %s888 = ssub.s32 128, 128
      %889 = vsyncadd [#allocation4], %s888
      %s891 = sshll.u32 [#allocation17], 4
      %s892 = int_to_ptr.vmem [resolvable:$true] %s891
      %894 = dma.vmem_to_hbm [thread:$0]  %s892, 128, %s10, [#allocation4]
    $region81: #{tpu_custom_call.1} parent=1 // pred_fallthru
      _
    // Predicated region
    $region82: #{tpu_custom_call.1} parent=1 // pred_check
      _
    $region83: #{tpu_custom_call.1} parent=1 // pred_check_branch
      %896 = sbr.rel (0) target = $region85
    $region84: #{tpu_custom_call.1} parent=1 // pred_region
      %897 = dma.done [#allocation4], 128
    $region85: #{tpu_custom_call.1} parent=1 // pred_fallthru
      _
    %898 = vsyncpa [#allocation3], 1
    %899 = vsyncpa [#allocation6], 1
    %900 = vsyncpa [#allocation9], 1
    %901 = vsyncpa [#allocation12], 1
    %902 = vsyncpa [#allocation15], 1
    %903 = vsyncpa [#allocation4], 1

// kernel: tpu_custom_call.1
$region0: #{tpu_custom_call.1}
  #allocation0 [shape = 'u32[]', space=smem, size = 0x4, offset = 0x4, fixed_abs, tag = 'smem constant byte address 0x4 - core index']
  #allocation1 [shape = 'u32[144,128]{1,0:T(1,128)}', space=vmem, size = 0x12000, scoped, tag = 'internal scratch']
  %s0 = inlined_call_operand.hbm [shape: f32[8,128], index: 0, kind: input, shape index: {}]
  %s1 = inlined_call_operand.hbm [shape: f32[128,128], index: 1, kind: input, shape index: {}]
  %s2 = inlined_call_operand.hbm [shape: f32[128,128], index: 2, kind: input, shape index: {}]
  %s3 = inlined_call_operand.hbm [shape: f32[128,128], index: 3, kind: input, shape index: {}]
  %s4 = inlined_call_operand.hbm [shape: f32[128,128], index: 4, kind: input, shape index: {}]
  %s5 = inlined_call_operand.hbm [shape: f32[128,128], index: 5, kind: input, shape index: {}]
  %s6 = inlined_call_operand.hbm [shape: f32[128,128], index: 6, kind: input, shape index: {}]
  %s7 = inlined_call_operand.hbm [shape: f32[128,128], index: 7, kind: input, shape index: {}]
  %s8 = inlined_call_operand.hbm [shape: f32[128,128], index: 8, kind: input, shape index: {}]
  %s9 = inlined_call_operand.vmem [shape: f32[8,128], index: 9, kind: input, shape index: {}]
  %s10 = inlined_call_operand.hbm [shape: f32[8,128], index: 10, kind: output, shape index: {}]
  %s11 = sld [smem:[#allocation0]]
  $region86: #{tpu_custom_call.1} parent=0
    _
  %s13 = ssub.s32 1, %s11
  %s14 = scalar_select 0, %s13, %s11
  $region1: #{tpu_custom_call.1} parent=0
    #allocation2 [shape = 'u8[4096]{0}', space=vmem, size = 0x1000, scoped, tag = 'input window, operand 0, single buffered']
    #allocation3 [shape = 's32[1]{0}', space=sflag, size = 0x4, scoped, tag = 'scoped memory for tpu_custom_call.1']
    #allocation4 [shape = 's32[1]{0}', space=sflag, size = 0x4, scoped, tag = 'scoped memory for tpu_custom_call.1']
    #allocation5 [shape = 'u8[65536]{0}', space=vmem, size = 0x10000, scoped, tag = 'input window, operand 1, single buffered']
    #allocation6 [shape = 's32[1]{0}', space=sflag, size = 0x4, scoped, tag = 'scoped memory for tpu_custom_call.1']
    #allocation7 [shape = 'u8[65536]{0}', space=vmem, size = 0x10000, scoped, tag = 'input window, operand 2, single buffered']
    #allocation8 [shape = 'u8[65536]{0}', space=vmem, size = 0x10000, scoped, tag = 'input window, operand 3, single buffered']
    #allocation9 [shape = 's32[1]{0}', space=sflag, size = 0x4, scoped, tag = 'scoped memory for tpu_custom_call.1']
    #allocation10 [shape = 'u8[65536]{0}', space=vmem, size = 0x10000, scoped, tag = 'input window, operand 4, single buffered']
    #allocation11 [shape = 'u8[65536]{0}', space=vmem, size = 0x10000, scoped, tag = 'input window, operand 5, single buffered']
    #allocation12 [shape = 's32[1]{0}', space=sflag, size = 0x4, scoped, tag = 'scoped memory for tpu_custom_call.1']
    #allocation13 [shape = 'u8[65536]{0}', space=vmem, size = 0x10000, scoped, tag = 'input window, operand 6, single buffered']
    #allocation14 [shape = 'u8[65536]{0}', space=vmem, size = 0x10000, scoped, tag = 'input window, operand 7, single buffered']
    #allocation15 [shape = 's32[1]{0}', space=sflag, size = 0x4, scoped, tag = 'scoped memory for tpu_custom_call.1']
    #allocation16 [shape = 'u8[65536]{0}', space=vmem, size = 0x10000, scoped, tag = 'input window, operand 8, single buffered']
    #allocation17 [shape = 'u8[4096]{0}', space=vmem, size = 0x1000, scoped, tag = 'output window, operand 0, single buffered']
    %15 = vsyncpa [#allocation3], 0
    %16 = vsyncpa [#allocation6], 0
    %17 = vsyncpa [#allocation9], 0
    %18 = vsyncpa [#allocation12], 0
    %19 = vsyncpa [#allocation15], 0
    %20 = vsyncpa [#allocation4], 0
    // Predicated region
    $region2: #{tpu_custom_call.1} parent=1 // pred_check
      _
    $region3: #{tpu_custom_call.1} parent=1 // pred_check_branch
      %22 = sbr.rel (0) target = $region5
    $region4: #{tpu_custom_call.1} parent=1 // pred_region
      %s24 = ssub.s32 128, 128
      %25 = vsyncadd [#allocation3], %s24
      %s27 = sshll.u32 [#allocation2], 4
      %s28 = int_to_ptr.vmem [resolvable:$true] %s27
      %30 = dma.hbm_to_vmem [thread:$0]  %s0, 128, %s28, [#allocation3]
    $region5: #{tpu_custom_call.1} parent=1 // pred_fallthru
      _
    // Predicated region
    $region6: #{tpu_custom_call.1} parent=1 // pred_check
      _
    $region7: #{tpu_custom_call.1} parent=1 // pred_check_branch
      %32 = sbr.rel (0) target = $region9
    $region8: #{tpu_custom_call.1} parent=1 // pred_region
      %s34 = ssub.s32 2048, 2048
      %35 = vsyncadd [#allocation6], %s34
      %s36 = sshll.u32 [#allocation5], 4
      %s37 = int_to_ptr.vmem [resolvable:$true] %s36
      %42 = dma.hbm_to_vmem [thread:$0]  %s1, 2048, %s37, [#allocation6], 128, 128, 8
    $region9: #{tpu_custom_call.1} parent=1 // pred_fallthru
      _
    // Predicated region
    $region10: #{tpu_custom_call.1} parent=1 // pred_check
      _
    $region11: #{tpu_custom_call.1} parent=1 // pred_check_branch
      %44 = sbr.rel (0) target = $region13
    $region12: #{tpu_custom_call.1} parent=1 // pred_region
      %s46 = ssub.s32 2048, 2048
      %47 = vsyncadd [#allocation6], %s46
      %s48 = sshll.u32 [#allocation7], 4
      %s49 = int_to_ptr.vmem [resolvable:$true] %s48
      %54 = dma.hbm_to_vmem [thread:$0]  %s2, 2048, %s49, [#allocation6], 128, 128, 8
    $region13: #{tpu_custom_call.1} parent=1 // pred_fallthru
      _
    // Predicated region
    $region14: #{tpu_custom_call.1} parent=1 // pred_check
      _
    $region15: #{tpu_custom_call.1} parent=1 // pred_check_branch
      %56 = sbr.rel (0) target = $region17
    $region16: #{tpu_custom_call.1} parent=1 // pred_region
      %s58 = ssub.s32 2048, 2048
      %59 = vsyncadd [#allocation9], %s58
      %s60 = sshll.u32 [#allocation8], 4
      %s61 = int_to_ptr.vmem [resolvable:$true] %s60
      %66 = dma.hbm_to_vmem [thread:$0]  %s3, 2048, %s61, [#allocation9], 128, 128, 8
    $region17: #{tpu_custom_call.1} parent=1 // pred_fallthru
      _
    // Predicated region
    $region18: #{tpu_custom_call.1} parent=1 // pred_check
      _
    $region19: #{tpu_custom_call.1} parent=1 // pred_check_branch
      %68 = sbr.rel (0) target = $region21
    $region20: #{tpu_custom_call.1} parent=1 // pred_region
      %s70 = ssub.s32 2048, 2048
      %71 = vsyncadd [#allocation9], %s70
      %s72 = sshll.u32 [#allocation10], 4
      %s73 = int_to_ptr.vmem [resolvable:$true] %s72
      %78 = dma.hbm_to_vmem [thread:$0]  %s4, 2048, %s73, [#allocation9], 128, 128, 8
    $region21: #{tpu_custom_call.1} parent=1 // pred_fallthru
      _
    // Predicated region
    $region22: #{tpu_custom_call.1} parent=1 // pred_check
      _
    $region23: #{tpu_custom_call.1} parent=1 // pred_check_branch
      %80 = sbr.rel (0) target = $region25
    $region24: #{tpu_custom_call.1} parent=1 // pred_region
      %s82 = ssub.s32 2048, 2048
      %83 = vsyncadd [#allocation12], %s82
      %s84 = sshll.u32 [#allocation11], 4
      %s85 = int_to_ptr.vmem [resolvable:$true] %s84
      %90 = dma.hbm_to_vmem [thread:$0]  %s5, 2048, %s85, [#allocation12], 128, 128, 8
    $region25: #{tpu_custom_call.1} parent=1 // pred_fallthru
      _
    // Predicated region
    $region26: #{tpu_custom_call.1} parent=1 // pred_check
      _
    $region27: #{tpu_custom_call.1} parent=1 // pred_check_branch
      %92 = sbr.rel (0) target = $region29
    $region28: #{tpu_custom_call.1} parent=1 // pred_region
      %s94 = ssub.s32 2048, 2048
      %95 = vsyncadd [#allocation12], %s94
      %s96 = sshll.u32 [#allocation13], 4
      %s97 = int_to_ptr.vmem [resolvable:$true] %s96
      %102 = dma.hbm_to_vmem [thread:$0]  %s6, 2048, %s97, [#allocation12], 128, 128, 8
    $region29: #{tpu_custom_call.1} parent=1 // pred_fallthru
      _
    // Predicated region
    $region30: #{tpu_custom_call.1} parent=1 // pred_check
      _
    $region31: #{tpu_custom_call.1} parent=1 // pred_check_branch
      %104 = sbr.rel (0) target = $region33
    $region32: #{tpu_custom_call.1} parent=1 // pred_region
      %s106 = ssub.s32 2048, 2048
      %107 = vsyncadd [#allocation15], %s106
      %s108 = sshll.u32 [#allocation14], 4
      %s109 = int_to_ptr.vmem [resolvable:$true] %s108
      %114 = dma.hbm_to_vmem [thread:$0]  %s7, 2048, %s109, [#allocation15], 128, 128, 8
    $region33: #{tpu_custom_call.1} parent=1 // pred_fallthru
      _
    // Predicated region
    $region34: #{tpu_custom_call.1} parent=1 // pred_check
      _
    $region35: #{tpu_custom_call.1} parent=1 // pred_check_branch
      %116 = sbr.rel (0) target = $region37
    $region36: #{tpu_custom_call.1} parent=1 // pred_region
      %s118 = ssub.s32 2048, 2048
      %119 = vsyncadd [#allocation15], %s118
      %s120 = sshll.u32 [#allocation16], 4
      %s121 = int_to_ptr.vmem [resolvable:$true] %s120
      %126 = dma.hbm_to_vmem [thread:$0]  %s8, 2048, %s121, [#allocation15], 128, 128, 8
    $region37: #{tpu_custom_call.1} parent=1 // pred_fallthru
      _
    // Predicated region
    $region38: #{tpu_custom_call.1} parent=1 // pred_check
      _
    $region39: #{tpu_custom_call.1} parent=1 // pred_check_branch
      %128 = sbr.rel (0) target = $region41
    $region40: #{tpu_custom_call.1} parent=1 // pred_region
      _
    $region41: #{tpu_custom_call.1} parent=1 // pred_fallthru
      _
    // Predicated region
    $region42: #{tpu_custom_call.1} parent=1 // pred_check
      _
    $region43: #{tpu_custom_call.1} parent=1 // pred_check_branch
      %130 = sbr.rel (0) target = $region45
    $region44: #{tpu_custom_call.1} parent=1 // pred_region
      %131 = dma.done [#allocation3], 128
    $region45: #{tpu_custom_call.1} parent=1 // pred_fallthru
      _
    // Predicated region
    $region46: #{tpu_custom_call.1} parent=1 // pred_check
      _
    $region47: #{tpu_custom_call.1} parent=1 // pred_check_branch
      %133 = sbr.rel (0) target = $region49
    $region48: #{tpu_custom_call.1} parent=1 // pred_region
      %134 = dma.done [#allocation6], 2048
    $region49: #{tpu_custom_call.1} parent=1 // pred_fallthru
      _
    // Predicated region
    $region50: #{tpu_custom_call.1} parent=1 // pred_check
      _
    $region51: #{tpu_custom_call.1} parent=1 // pred_check_branch
      %136 = sbr.rel (0) target = $region53
    $region52: #{tpu_custom_call.1} parent=1 // pred_region
      %137 = dma.done [#allocation6], 2048
    $region53: #{tpu_custom_call.1} parent=1 // pred_fallthru
      _
    // Predicated region
    $region54: #{tpu_custom_call.1} parent=1 // pred_check
      _
    $region55: #{tpu_custom_call.1} parent=1 // pred_check_branch
      %139 = sbr.rel (0) target = $region57
    $region56: #{tpu_custom_call.1} parent=1 // pred_region
      %140 = dma.done [#allocation9], 2048
    $region57: #{tpu_custom_call.1} parent=1 // pred_fallthru
      _
    // Predicated region
    $region58: #{tpu_custom_call.1} parent=1 // pred_check
      _
    $region59: #{tpu_custom_call.1} parent=1 // pred_check_branch
      %142 = sbr.rel (0) target = $region61
    $region60: #{tpu_custom_call.1} parent=1 // pred_region
      %143 = dma.done [#allocation9], 2048
    $region61: #{tpu_custom_call.1} parent=1 // pred_fallthru
      _
    // Predicated region
    $region62: #{tpu_custom_call.1} parent=1 // pred_check
      _
    $region63: #{tpu_custom_call.1} parent=1 // pred_check_branch
      %145 = sbr.rel (0) target = $region65
    $region64: #{tpu_custom_call.1} parent=1 // pred_region
      %146 = dma.done [#allocation12], 2048
    $region65: #{tpu_custom_call.1} parent=1 // pred_fallthru
      _
    // Predicated region
    $region66: #{tpu_custom_call.1} parent=1 // pred_check
      _
    $region67: #{tpu_custom_call.1} parent=1 // pred_check_branch
      %148 = sbr.rel (0) target = $region69
    $region68: #{tpu_custom_call.1} parent=1 // pred_region
      %149 = dma.done [#allocation12], 2048
    $region69: #{tpu_custom_call.1} parent=1 // pred_fallthru
      _
    // Predicated region
    $region70: #{tpu_custom_call.1} parent=1 // pred_check
      _
    $region71: #{tpu_custom_call.1} parent=1 // pred_check_branch
      %151 = sbr.rel (0) target = $region73
    $region72: #{tpu_custom_call.1} parent=1 // pred_region
      %152 = dma.done [#allocation15], 2048
    $region73: #{tpu_custom_call.1} parent=1 // pred_fallthru
      _
    // Predicated region
    $region74: #{tpu_custom_call.1} parent=1 // pred_check
      _
    $region75: #{tpu_custom_call.1} parent=1 // pred_check_branch
      %154 = sbr.rel (0) target = $region77
    $region76: #{tpu_custom_call.1} parent=1 // pred_region
      %155 = dma.done [#allocation15], 2048
    $region77: #{tpu_custom_call.1} parent=1 // pred_fallthru
      _
    %v156 = vld [vmem:[%s9] sm:$0xff]
    %v157 = vld [vmem:[#allocation2] sm:$0xff]
    %v158 = vld [vmem:[#allocation5] sm:$0xff]
    %v159 = vld [vmem:[#allocation5 + $0x8] sm:$0xff]
    %v160 = vld [vmem:[#allocation5 + $0x10] sm:$0xff]
    %v161 = vld [vmem:[#allocation5 + $0x18] sm:$0xff]
    %v162 = vld [vmem:[#allocation5 + $0x20] sm:$0xff]
    %v163 = vld [vmem:[#allocation5 + $0x28] sm:$0xff]
    %v164 = vld [vmem:[#allocation5 + $0x30] sm:$0xff]
    %v165 = vld [vmem:[#allocation5 + $0x38] sm:$0xff]
    %v166 = vld [vmem:[#allocation5 + $0x40] sm:$0xff]
    %v167 = vld [vmem:[#allocation5 + $0x48] sm:$0xff]
    %v168 = vld [vmem:[#allocation5 + $0x50] sm:$0xff]
    %v169 = vld [vmem:[#allocation5 + $0x58] sm:$0xff]
    %v170 = vld [vmem:[#allocation5 + $0x60] sm:$0xff]
    %v171 = vld [vmem:[#allocation5 + $0x68] sm:$0xff]
    %v172 = vld [vmem:[#allocation5 + $0x70] sm:$0xff]
    %v173 = vld [vmem:[#allocation5 + $0x78] sm:$0xff]
    %v174 = vlaneseq
    %v175 = vshrl.u32 %v174, 7
    %v176 = vsub.s32 0, %v175
    %v177 = vrot.slane %v156, %v176
    %178 = vmatprep.subr.mxu0 0.0
    %179 = vmatpush1.msra.mxu0 %v173
    %180 = vmatprep.subr.mxu0 0.0
    %181 = vmatpush1.msra.mxu0 %v172
    %182 = vmatprep.subr.mxu0 0.0
    %183 = vmatpush1.msra.mxu0 %v171
    %184 = vmatprep.subr.mxu0 0.0
    %185 = vmatpush1.msra.mxu0 %v170
    %186 = vmatprep.subr.mxu0 0.0
    %187 = vmatpush1.msra.mxu0 %v169
    %188 = vmatprep.subr.mxu0 0.0
    %189 = vmatpush1.msra.mxu0 %v168
    %190 = vmatprep.subr.mxu0 0.0
    %191 = vmatpush1.msra.mxu0 %v167
    %192 = vmatprep.subr.mxu0 0.0
    %193 = vmatpush1.msra.mxu0 %v166
    %194 = vmatprep.subr.mxu0 0.0
    %195 = vmatpush1.msra.mxu0 %v165
    %196 = vmatprep.subr.mxu0 0.0
    %197 = vmatpush1.msra.mxu0 %v164
    %198 = vmatprep.subr.mxu0 0.0
    %199 = vmatpush1.msra.mxu0 %v163
    %200 = vmatprep.subr.mxu0 0.0
    %201 = vmatpush1.msra.mxu0 %v162
    %202 = vmatprep.subr.mxu0 0.0
    %203 = vmatpush1.msra.mxu0 %v161
    %204 = vmatprep.subr.mxu0 0.0
    %205 = vmatpush1.msra.mxu0 %v160
    %206 = vmatprep.subr.mxu0 0.0
    %207 = vmatpush1.msra.mxu0 %v159
    %208 = vmatprep.subr.mxu0 0.0
    %209 = vmatpush1.msra.mxu0 %v158
    %210 = vmatprep.subr.mxu0 0.0
    %211 = vmatpush2.msra.mxu0 0.0
    %212 = vmatprep.subr.mxu0 0.0
    %213 = vmatpush2.msra.mxu0 0.0
    %214 = vmatprep.subr.mxu0 0.0
    %215 = vmatpush2.msra.mxu0 0.0
    %216 = vmatprep.subr.mxu0 0.0
    %217 = vmatpush2.msra.mxu0 0.0
    %218 = vmatprep.subr.mxu0 0.0
    %219 = vmatpush2.msra.mxu0 0.0
    %220 = vmatprep.subr.mxu0 0.0
    %221 = vmatpush2.msra.mxu0 0.0
    %222 = vmatprep.subr.mxu0 0.0
    %223 = vmatpush2.msra.mxu0 0.0
    %224 = vmatprep.subr.mxu0 0.0
    %225 = vmatpush2.msra.mxu0 0.0
    %226 = vmatprep.subr.mxu0 0.0
    %227 = vmatpush2.msra.mxu0 0.0
    %228 = vmatprep.subr.mxu0 0.0
    %229 = vmatpush2.msra.mxu0 0.0
    %230 = vmatprep.subr.mxu0 0.0
    %231 = vmatpush2.msra.mxu0 0.0
    %232 = vmatprep.subr.mxu0 0.0
    %233 = vmatpush2.msra.mxu0 0.0
    %234 = vmatprep.subr.mxu0 0.0
    %235 = vmatpush2.msra.mxu0 0.0
    %236 = vmatprep.subr.mxu0 0.0
    %237 = vmatpush2.msra.mxu0 0.0
    %238 = vmatprep.subr.mxu0 0.0
    %239 = vmatpush2.msra.mxu0 0.0
    %240 = vmatprep.subr.mxu0 0.0
    %241 = vmatpush2.msra.mxu0 0.0
    %242 = vmatprep.mubr.f32.mxu0 0.0
    %243 = vmatmul.mubr.f32.gmra.mxu0 %v157
    %v244 = vpop.f32.mrf.mxu0
    %v245 = vadd.f32 %v177, %v244
    %v246 = vpop.f32.mrf.mxu0
    %247 = vdwg.mxu0
    %v248 = vmax.f32 %v245, 0.0
    %v249 = vld [vmem:[#allocation7] sm:$0xff]
    %v250 = vld [vmem:[#allocation7 + $0x8] sm:$0xff]
    %v251 = vld [vmem:[#allocation7 + $0x10] sm:$0xff]
    %v252 = vld [vmem:[#allocation7 + $0x18] sm:$0xff]
    %v253 = vld [vmem:[#allocation7 + $0x20] sm:$0xff]
    %v254 = vld [vmem:[#allocation7 + $0x28] sm:$0xff]
    %v255 = vld [vmem:[#allocation7 + $0x30] sm:$0xff]
    %v256 = vld [vmem:[#allocation7 + $0x38] sm:$0xff]
    %v257 = vld [vmem:[#allocation7 + $0x40] sm:$0xff]
    %v258 = vld [vmem:[#allocation7 + $0x48] sm:$0xff]
    %v259 = vld [vmem:[#allocation7 + $0x50] sm:$0xff]
    %v260 = vld [vmem:[#allocation7 + $0x58] sm:$0xff]
    %v261 = vld [vmem:[#allocation7 + $0x60] sm:$0xff]
    %v262 = vld [vmem:[#allocation7 + $0x68] sm:$0xff]
    %v263 = vld [vmem:[#allocation7 + $0x70] sm:$0xff]
    %v264 = vld [vmem:[#allocation7 + $0x78] sm:$0xff]
    %v265 = vlaneseq
    %v266 = vshrl.u32 %v265, 7
    %v267 = vsub.s32 1, %v266
    %v268 = vrot.slane %v156, %v267
    %269 = vmatprep.subr.mxu0 0.0
    %270 = vmatpush1.msra.mxu0 %v264
    %271 = vmatprep.subr.mxu0 0.0
    %272 = vmatpush1.msra.mxu0 %v263
    %273 = vmatprep.subr.mxu0 0.0
    %274 = vmatpush1.msra.mxu0 %v262
    %275 = vmatprep.subr.mxu0 0.0
    %276 = vmatpush1.msra.mxu0 %v261
    %277 = vmatprep.subr.mxu0 0.0
    %278 = vmatpush1.msra.mxu0 %v260
    %279 = vmatprep.subr.mxu0 0.0
    %280 = vmatpush1.msra.mxu0 %v259
    %281 = vmatprep.subr.mxu0 0.0
    %282 = vmatpush1.msra.mxu0 %v258
    %283 = vmatprep.subr.mxu0 0.0
    %284 = vmatpush1.msra.mxu0 %v257
    %285 = vmatprep.subr.mxu0 0.0
    %286 = vmatpush1.msra.mxu0 %v256
    %287 = vmatprep.subr.mxu0 0.0
    %288 = vmatpush1.msra.mxu0 %v255
    %289 = vmatprep.subr.mxu0 0.0
    %290 = vmatpush1.msra.mxu0 %v254
    %291 = vmatprep.subr.mxu0 0.0
    %292 = vmatpush1.msra.mxu0 %v253
    %293 = vmatprep.subr.mxu0 0.0
    %294 = vmatpush1.msra.mxu0 %v252
    %295 = vmatprep.subr.mxu0 0.0
    %296 = vmatpush1.msra.mxu0 %v251
    %297 = vmatprep.subr.mxu0 0.0
    %298 = vmatpush1.msra.mxu0 %v250
    %299 = vmatprep.subr.mxu0 0.0
    %300 = vmatpush1.msra.mxu0 %v249
    %301 = vmatprep.subr.mxu0 0.0
    %302 = vmatpush2.msra.mxu0 0.0
    %303 = vmatprep.subr.mxu0 0.0
    %304 = vmatpush2.msra.mxu0 0.0
    %305 = vmatprep.subr.mxu0 0.0
    %306 = vmatpush2.msra.mxu0 0.0
    %307 = vmatprep.subr.mxu0 0.0
    %308 = vmatpush2.msra.mxu0 0.0
    %309 = vmatprep.subr.mxu0 0.0
    %310 = vmatpush2.msra.mxu0 0.0
    %311 = vmatprep.subr.mxu0 0.0
    %312 = vmatpush2.msra.mxu0 0.0
    %313 = vmatprep.subr.mxu0 0.0
    %314 = vmatpush2.msra.mxu0 0.0
    %315 = vmatprep.subr.mxu0 0.0
    %316 = vmatpush2.msra.mxu0 0.0
    %317 = vmatprep.subr.mxu0 0.0
    %318 = vmatpush2.msra.mxu0 0.0
    %319 = vmatprep.subr.mxu0 0.0
    %320 = vmatpush2.msra.mxu0 0.0
    %321 = vmatprep.subr.mxu0 0.0
    %322 = vmatpush2.msra.mxu0 0.0
    %323 = vmatprep.subr.mxu0 0.0
    %324 = vmatpush2.msra.mxu0 0.0
    %325 = vmatprep.subr.mxu0 0.0
    %326 = vmatpush2.msra.mxu0 0.0
    %327 = vmatprep.subr.mxu0 0.0
    %328 = vmatpush2.msra.mxu0 0.0
    %329 = vmatprep.subr.mxu0 0.0
    %330 = vmatpush2.msra.mxu0 0.0
    %331 = vmatprep.subr.mxu0 0.0
    %332 = vmatpush2.msra.mxu0 0.0
    %333 = vmatprep.mubr.f32.mxu0 0.0
    %334 = vmatmul.mubr.f32.gmra.mxu0 %v248
    %v335 = vpop.f32.mrf.mxu0
    %v336 = vadd.f32 %v268, %v335
    %v337 = vpop.f32.mrf.mxu0
    %338 = vdwg.mxu0
    %v339 = vmax.f32 %v336, 0.0
    %v340 = vld [vmem:[#allocation8] sm:$0xff]
    %v341 = vld [vmem:[#allocation8 + $0x8] sm:$0xff]
    %v342 = vld [vmem:[#allocation8 + $0x10] sm:$0xff]
    %v343 = vld [vmem:[#allocation8 + $0x18] sm:$0xff]
    %v344 = vld [vmem:[#allocation8 + $0x20] sm:$0xff]
    %v345 = vld [vmem:[#allocation8 + $0x28] sm:$0xff]
    %v346 = vld [vmem:[#allocation8 + $0x30] sm:$0xff]
    %v347 = vld [vmem:[#allocation8 + $0x38] sm:$0xff]
    %v348 = vld [vmem:[#allocation8 + $0x40] sm:$0xff]
    %v349 = vld [vmem:[#allocation8 + $0x48] sm:$0xff]
    %v350 = vld [vmem:[#allocation8 + $0x50] sm:$0xff]
    %v351 = vld [vmem:[#allocation8 + $0x58] sm:$0xff]
    %v352 = vld [vmem:[#allocation8 + $0x60] sm:$0xff]
    %v353 = vld [vmem:[#allocation8 + $0x68] sm:$0xff]
    %v354 = vld [vmem:[#allocation8 + $0x70] sm:$0xff]
    %v355 = vld [vmem:[#allocation8 + $0x78] sm:$0xff]
    %v356 = vlaneseq
    %v357 = vshrl.u32 %v356, 7
    %v358 = vsub.s32 2, %v357
    %v359 = vrot.slane %v156, %v358
    %360 = vmatprep.subr.mxu0 0.0
    %361 = vmatpush1.msra.mxu0 %v355
    %362 = vmatprep.subr.mxu0 0.0
    %363 = vmatpush1.msra.mxu0 %v354
    %364 = vmatprep.subr.mxu0 0.0
    %365 = vmatpush1.msra.mxu0 %v353
    %366 = vmatprep.subr.mxu0 0.0
    %367 = vmatpush1.msra.mxu0 %v352
    %368 = vmatprep.subr.mxu0 0.0
    %369 = vmatpush1.msra.mxu0 %v351
    %370 = vmatprep.subr.mxu0 0.0
    %371 = vmatpush1.msra.mxu0 %v350
    %372 = vmatprep.subr.mxu0 0.0
    %373 = vmatpush1.msra.mxu0 %v349
    %374 = vmatprep.subr.mxu0 0.0
    %375 = vmatpush1.msra.mxu0 %v348
    %376 = vmatprep.subr.mxu0 0.0
    %377 = vmatpush1.msra.mxu0 %v347
    %378 = vmatprep.subr.mxu0 0.0
    %379 = vmatpush1.msra.mxu0 %v346
    %380 = vmatprep.subr.mxu0 0.0
    %381 = vmatpush1.msra.mxu0 %v345
    %382 = vmatprep.subr.mxu0 0.0
    %383 = vmatpush1.msra.mxu0 %v344
    %384 = vmatprep.subr.mxu0 0.0
    %385 = vmatpush1.msra.mxu0 %v343
    %386 = vmatprep.subr.mxu0 0.0
    %387 = vmatpush1.msra.mxu0 %v342
    %388 = vmatprep.subr.mxu0 0.0
    %389 = vmatpush1.msra.mxu0 %v341
    %390 = vmatprep.subr.mxu0 0.0
    %391 = vmatpush1.msra.mxu0 %v340
    %392 = vmatprep.subr.mxu0 0.0
    %393 = vmatpush2.msra.mxu0 0.0
    %394 = vmatprep.subr.mxu0 0.0
    %395 = vmatpush2.msra.mxu0 0.0
    %396 = vmatprep.subr.mxu0 0.0
    %397 = vmatpush2.msra.mxu0 0.0
    %398 = vmatprep.subr.mxu0 0.0
    %399 = vmatpush2.msra.mxu0 0.0
    %400 = vmatprep.subr.mxu0 0.0
    %401 = vmatpush2.msra.mxu0 0.0
    %402 = vmatprep.subr.mxu0 0.0
    %403 = vmatpush2.msra.mxu0 0.0
    %404 = vmatprep.subr.mxu0 0.0
    %405 = vmatpush2.msra.mxu0 0.0
    %406 = vmatprep.subr.mxu0 0.0
    %407 = vmatpush2.msra.mxu0 0.0
    %408 = vmatprep.subr.mxu0 0.0
    %409 = vmatpush2.msra.mxu0 0.0
    %410 = vmatprep.subr.mxu0 0.0
    %411 = vmatpush2.msra.mxu0 0.0
    %412 = vmatprep.subr.mxu0 0.0
    %413 = vmatpush2.msra.mxu0 0.0
    %414 = vmatprep.subr.mxu0 0.0
    %415 = vmatpush2.msra.mxu0 0.0
    %416 = vmatprep.subr.mxu0 0.0
    %417 = vmatpush2.msra.mxu0 0.0
    %418 = vmatprep.subr.mxu0 0.0
    %419 = vmatpush2.msra.mxu0 0.0
    %420 = vmatprep.subr.mxu0 0.0
    %421 = vmatpush2.msra.mxu0 0.0
    %422 = vmatprep.subr.mxu0 0.0
    %423 = vmatpush2.msra.mxu0 0.0
    %424 = vmatprep.mubr.f32.mxu0 0.0
    %425 = vmatmul.mubr.f32.gmra.mxu0 %v339
    %v426 = vpop.f32.mrf.mxu0
    %v427 = vadd.f32 %v359, %v426
    %v428 = vpop.f32.mrf.mxu0
    %429 = vdwg.mxu0
    %v430 = vmax.f32 %v427, 0.0
    %v431 = vld [vmem:[#allocation10] sm:$0xff]
    %v432 = vld [vmem:[#allocation10 + $0x8] sm:$0xff]
    %v433 = vld [vmem:[#allocation10 + $0x10] sm:$0xff]
    %v434 = vld [vmem:[#allocation10 + $0x18] sm:$0xff]
    %v435 = vld [vmem:[#allocation10 + $0x20] sm:$0xff]
    %v436 = vld [vmem:[#allocation10 + $0x28] sm:$0xff]
    %v437 = vld [vmem:[#allocation10 + $0x30] sm:$0xff]
    %v438 = vld [vmem:[#allocation10 + $0x38] sm:$0xff]
    %v439 = vld [vmem:[#allocation10 + $0x40] sm:$0xff]
    %v440 = vld [vmem:[#allocation10 + $0x48] sm:$0xff]
    %v441 = vld [vmem:[#allocation10 + $0x50] sm:$0xff]
    %v442 = vld [vmem:[#allocation10 + $0x58] sm:$0xff]
    %v443 = vld [vmem:[#allocation10 + $0x60] sm:$0xff]
    %v444 = vld [vmem:[#allocation10 + $0x68] sm:$0xff]
    %v445 = vld [vmem:[#allocation10 + $0x70] sm:$0xff]
    %v446 = vld [vmem:[#allocation10 + $0x78] sm:$0xff]
    %v447 = vlaneseq
    %v448 = vshrl.u32 %v447, 7
    %v449 = vsub.s32 3, %v448
    %v450 = vrot.slane %v156, %v449
    %451 = vmatprep.subr.mxu0 0.0
    %452 = vmatpush1.msra.mxu0 %v446
    %453 = vmatprep.subr.mxu0 0.0
    %454 = vmatpush1.msra.mxu0 %v445
    %455 = vmatprep.subr.mxu0 0.0
    %456 = vmatpush1.msra.mxu0 %v444
    %457 = vmatprep.subr.mxu0 0.0
    %458 = vmatpush1.msra.mxu0 %v443
    %459 = vmatprep.subr.mxu0 0.0
    %460 = vmatpush1.msra.mxu0 %v442
    %461 = vmatprep.subr.mxu0 0.0
    %462 = vmatpush1.msra.mxu0 %v441
    %463 = vmatprep.subr.mxu0 0.0
    %464 = vmatpush1.msra.mxu0 %v440
    %465 = vmatprep.subr.mxu0 0.0
    %466 = vmatpush1.msra.mxu0 %v439
    %467 = vmatprep.subr.mxu0 0.0
    %468 = vmatpush1.msra.mxu0 %v438
    %469 = vmatprep.subr.mxu0 0.0
    %470 = vmatpush1.msra.mxu0 %v437
    %471 = vmatprep.subr.mxu0 0.0
    %472 = vmatpush1.msra.mxu0 %v436
    %473 = vmatprep.subr.mxu0 0.0
    %474 = vmatpush1.msra.mxu0 %v435
    %475 = vmatprep.subr.mxu0 0.0
    %476 = vmatpush1.msra.mxu0 %v434
    %477 = vmatprep.subr.mxu0 0.0
    %478 = vmatpush1.msra.mxu0 %v433
    %479 = vmatprep.subr.mxu0 0.0
    %480 = vmatpush1.msra.mxu0 %v432
    %481 = vmatprep.subr.mxu0 0.0
    %482 = vmatpush1.msra.mxu0 %v431
    %483 = vmatprep.subr.mxu0 0.0
    %484 = vmatpush2.msra.mxu0 0.0
    %485 = vmatprep.subr.mxu0 0.0
    %486 = vmatpush2.msra.mxu0 0.0
    %487 = vmatprep.subr.mxu0 0.0
    %488 = vmatpush2.msra.mxu0 0.0
    %489 = vmatprep.subr.mxu0 0.0
    %490 = vmatpush2.msra.mxu0 0.0
    %491 = vmatprep.subr.mxu0 0.0
    %492 = vmatpush2.msra.mxu0 0.0
    %493 = vmatprep.subr.mxu0 0.0
    %494 = vmatpush2.msra.mxu0 0.0
    %495 = vmatprep.subr.mxu0 0.0
    %496 = vmatpush2.msra.mxu0 0.0
    %497 = vmatprep.subr.mxu0 0.0
    %498 = vmatpush2.msra.mxu0 0.0
    %499 = vmatprep.subr.mxu0 0.0
    %500 = vmatpush2.msra.mxu0 0.0
    %501 = vmatprep.subr.mxu0 0.0
    %502 = vmatpush2.msra.mxu0 0.0
    %503 = vmatprep.subr.mxu0 0.0
    %504 = vmatpush2.msra.mxu0 0.0
    %505 = vmatprep.subr.mxu0 0.0
    %506 = vmatpush2.msra.mxu0 0.0
    %507 = vmatprep.subr.mxu0 0.0
    %508 = vmatpush2.msra.mxu0 0.0
    %509 = vmatprep.subr.mxu0 0.0
    %510 = vmatpush2.msra.mxu0 0.0
    %511 = vmatprep.subr.mxu0 0.0
    %512 = vmatpush2.msra.mxu0 0.0
    %513 = vmatprep.subr.mxu0 0.0
    %514 = vmatpush2.msra.mxu0 0.0
    %515 = vmatprep.mubr.f32.mxu0 0.0
    %516 = vmatmul.mubr.f32.gmra.mxu0 %v430
    %v517 = vpop.f32.mrf.mxu0
    %v518 = vadd.f32 %v450, %v517
    %v519 = vpop.f32.mrf.mxu0
    %520 = vdwg.mxu0
    %v521 = vld [vmem:[#allocation11] sm:$0xff]
    %v522 = vld [vmem:[#allocation11 + $0x8] sm:$0xff]
    %v523 = vld [vmem:[#allocation11 + $0x10] sm:$0xff]
    %v524 = vld [vmem:[#allocation11 + $0x18] sm:$0xff]
    %v525 = vld [vmem:[#allocation11 + $0x20] sm:$0xff]
    %v526 = vld [vmem:[#allocation11 + $0x28] sm:$0xff]
    %v527 = vld [vmem:[#allocation11 + $0x30] sm:$0xff]
    %v528 = vld [vmem:[#allocation11 + $0x38] sm:$0xff]
    %v529 = vld [vmem:[#allocation11 + $0x40] sm:$0xff]
    %v530 = vld [vmem:[#allocation11 + $0x48] sm:$0xff]
    %v531 = vld [vmem:[#allocation11 + $0x50] sm:$0xff]
    %v532 = vld [vmem:[#allocation11 + $0x58] sm:$0xff]
    %v533 = vld [vmem:[#allocation11 + $0x60] sm:$0xff]
    %v534 = vld [vmem:[#allocation11 + $0x68] sm:$0xff]
    %v535 = vld [vmem:[#allocation11 + $0x70] sm:$0xff]
    %v536 = vld [vmem:[#allocation11 + $0x78] sm:$0xff]
    %v537 = vlaneseq
    %v538 = vshrl.u32 %v537, 7
    %v539 = vsub.s32 4, %v538
    %v540 = vrot.slane %v156, %v539
    %541 = vmatprep.subr.mxu0 0.0
    %542 = vmatpush1.msra.mxu0 %v536
    %543 = vmatprep.subr.mxu0 0.0
    %544 = vmatpush1.msra.mxu0 %v535
    %545 = vmatprep.subr.mxu0 0.0
    %546 = vmatpush1.msra.mxu0 %v534
    %547 = vmatprep.subr.mxu0 0.0
    %548 = vmatpush1.msra.mxu0 %v533
    %549 = vmatprep.subr.mxu0 0.0
    %550 = vmatpush1.msra.mxu0 %v532
    %551 = vmatprep.subr.mxu0 0.0
    %552 = vmatpush1.msra.mxu0 %v531
    %553 = vmatprep.subr.mxu0 0.0
    %554 = vmatpush1.msra.mxu0 %v530
    %555 = vmatprep.subr.mxu0 0.0
    %556 = vmatpush1.msra.mxu0 %v529
    %557 = vmatprep.subr.mxu0 0.0
    %558 = vmatpush1.msra.mxu0 %v528
    %559 = vmatprep.subr.mxu0 0.0
    %560 = vmatpush1.msra.mxu0 %v527
    %561 = vmatprep.subr.mxu0 0.0
    %562 = vmatpush1.msra.mxu0 %v526
    %563 = vmatprep.subr.mxu0 0.0
    %564 = vmatpush1.msra.mxu0 %v525
    %565 = vmatprep.subr.mxu0 0.0
    %566 = vmatpush1.msra.mxu0 %v524
    %567 = vmatprep.subr.mxu0 0.0
    %568 = vmatpush1.msra.mxu0 %v523
    %569 = vmatprep.subr.mxu0 0.0
    %570 = vmatpush1.msra.mxu0 %v522
    %571 = vmatprep.subr.mxu0 0.0
    %572 = vmatpush1.msra.mxu0 %v521
    %573 = vmatprep.subr.mxu0 0.0
    %574 = vmatpush2.msra.mxu0 0.0
    %575 = vmatprep.subr.mxu0 0.0
    %576 = vmatpush2.msra.mxu0 0.0
    %577 = vmatprep.subr.mxu0 0.0
    %578 = vmatpush2.msra.mxu0 0.0
    %579 = vmatprep.subr.mxu0 0.0
    %580 = vmatpush2.msra.mxu0 0.0
    %581 = vmatprep.subr.mxu0 0.0
    %582 = vmatpush2.msra.mxu0 0.0
    %583 = vmatprep.subr.mxu0 0.0
    %584 = vmatpush2.msra.mxu0 0.0
    %585 = vmatprep.subr.mxu0 0.0
    %586 = vmatpush2.msra.mxu0 0.0
    %587 = vmatprep.subr.mxu0 0.0
    %588 = vmatpush2.msra.mxu0 0.0
    %589 = vmatprep.subr.mxu0 0.0
    %590 = vmatpush2.msra.mxu0 0.0
    %591 = vmatprep.subr.mxu0 0.0
    %592 = vmatpush2.msra.mxu0 0.0
    %593 = vmatprep.subr.mxu0 0.0
    %594 = vmatpush2.msra.mxu0 0.0
    %595 = vmatprep.subr.mxu0 0.0
    %596 = vmatpush2.msra.mxu0 0.0
    %597 = vmatprep.subr.mxu0 0.0
    %598 = vmatpush2.msra.mxu0 0.0
    %599 = vmatprep.subr.mxu0 0.0
    %600 = vmatpush2.msra.mxu0 0.0
    %601 = vmatprep.subr.mxu0 0.0
    %602 = vmatpush2.msra.mxu0 0.0
    %603 = vmatprep.subr.mxu0 0.0
    %604 = vmatpush2.msra.mxu0 0.0
    %605 = vmatprep.mubr.f32.mxu0 0.0
    %606 = vmatmul.mubr.f32.gmra.mxu0 %v518
    %v607 = vpop.f32.mrf.mxu0
    %v608 = vadd.f32 %v540, %v607
    %v609 = vpop.f32.mrf.mxu0
    %610 = vdwg.mxu0
    %v611 = vmax.f32 %v608, 0.0
    %v612 = vld [vmem:[#allocation13] sm:$0xff]
    %v613 = vld [vmem:[#allocation13 + $0x8] sm:$0xff]
    %v614 = vld [vmem:[#allocation13 + $0x10] sm:$0xff]
    %v615 = vld [vmem:[#allocation13 + $0x18] sm:$0xff]
    %v616 = vld [vmem:[#allocation13 + $0x20] sm:$0xff]
    %v617 = vld [vmem:[#allocation13 + $0x28] sm:$0xff]
    %v618 = vld [vmem:[#allocation13 + $0x30] sm:$0xff]
    %v619 = vld [vmem:[#allocation13 + $0x38] sm:$0xff]
    %v620 = vld [vmem:[#allocation13 + $0x40] sm:$0xff]
    %v621 = vld [vmem:[#allocation13 + $0x48] sm:$0xff]
    %v622 = vld [vmem:[#allocation13 + $0x50] sm:$0xff]
    %v623 = vld [vmem:[#allocation13 + $0x58] sm:$0xff]
    %v624 = vld [vmem:[#allocation13 + $0x60] sm:$0xff]
    %v625 = vld [vmem:[#allocation13 + $0x68] sm:$0xff]
    %v626 = vld [vmem:[#allocation13 + $0x70] sm:$0xff]
    %v627 = vld [vmem:[#allocation13 + $0x78] sm:$0xff]
    %v628 = vlaneseq
    %v629 = vshrl.u32 %v628, 7
    %v630 = vsub.s32 5, %v629
    %v631 = vrot.slane %v156, %v630
    %632 = vmatprep.subr.mxu0 0.0
    %633 = vmatpush1.msra.mxu0 %v627
    %634 = vmatprep.subr.mxu0 0.0
    %635 = vmatpush1.msra.mxu0 %v626
    %636 = vmatprep.subr.mxu0 0.0
    %637 = vmatpush1.msra.mxu0 %v625
    %638 = vmatprep.subr.mxu0 0.0
    %639 = vmatpush1.msra.mxu0 %v624
    %640 = vmatprep.subr.mxu0 0.0
    %641 = vmatpush1.msra.mxu0 %v623
    %642 = vmatprep.subr.mxu0 0.0
    %643 = vmatpush1.msra.mxu0 %v622
    %644 = vmatprep.subr.mxu0 0.0
    %645 = vmatpush1.msra.mxu0 %v621
    %646 = vmatprep.subr.mxu0 0.0
    %647 = vmatpush1.msra.mxu0 %v620
    %648 = vmatprep.subr.mxu0 0.0
    %649 = vmatpush1.msra.mxu0 %v619
    %650 = vmatprep.subr.mxu0 0.0
    %651 = vmatpush1.msra.mxu0 %v618
    %652 = vmatprep.subr.mxu0 0.0
    %653 = vmatpush1.msra.mxu0 %v617
    %654 = vmatprep.subr.mxu0 0.0
    %655 = vmatpush1.msra.mxu0 %v616
    %656 = vmatprep.subr.mxu0 0.0
    %657 = vmatpush1.msra.mxu0 %v615
    %658 = vmatprep.subr.mxu0 0.0
    %659 = vmatpush1.msra.mxu0 %v614
    %660 = vmatprep.subr.mxu0 0.0
    %661 = vmatpush1.msra.mxu0 %v613
    %662 = vmatprep.subr.mxu0 0.0
    %663 = vmatpush1.msra.mxu0 %v612
    %664 = vmatprep.subr.mxu0 0.0
    %665 = vmatpush2.msra.mxu0 0.0
    %666 = vmatprep.subr.mxu0 0.0
    %667 = vmatpush2.msra.mxu0 0.0
    %668 = vmatprep.subr.mxu0 0.0
    %669 = vmatpush2.msra.mxu0 0.0
    %670 = vmatprep.subr.mxu0 0.0
    %671 = vmatpush2.msra.mxu0 0.0
    %672 = vmatprep.subr.mxu0 0.0
    %673 = vmatpush2.msra.mxu0 0.0
    %674 = vmatprep.subr.mxu0 0.0
    %675 = vmatpush2.msra.mxu0 0.0
    %676 = vmatprep.subr.mxu0 0.0
    %677 = vmatpush2.msra.mxu0 0.0
    %678 = vmatprep.subr.mxu0 0.0
    %679 = vmatpush2.msra.mxu0 0.0
    %680 = vmatprep.subr.mxu0 0.0
    %681 = vmatpush2.msra.mxu0 0.0
    %682 = vmatprep.subr.mxu0 0.0
    %683 = vmatpush2.msra.mxu0 0.0
    %684 = vmatprep.subr.mxu0 0.0
    %685 = vmatpush2.msra.mxu0 0.0
    %686 = vmatprep.subr.mxu0 0.0
    %687 = vmatpush2.msra.mxu0 0.0
    %688 = vmatprep.subr.mxu0 0.0
    %689 = vmatpush2.msra.mxu0 0.0
    %690 = vmatprep.subr.mxu0 0.0
    %691 = vmatpush2.msra.mxu0 0.0
    %692 = vmatprep.subr.mxu0 0.0
    %693 = vmatpush2.msra.mxu0 0.0
    %694 = vmatprep.subr.mxu0 0.0
    %695 = vmatpush2.msra.mxu0 0.0
    %696 = vmatprep.mubr.f32.mxu0 0.0
    %697 = vmatmul.mubr.f32.gmra.mxu0 %v611
    %v698 = vpop.f32.mrf.mxu0
    %v699 = vadd.f32 %v631, %v698
    %v700 = vpop.f32.mrf.mxu0
    %701 = vdwg.mxu0
    %v702 = vmax.f32 %v699, 0.0
    %v703 = vld [vmem:[#allocation14] sm:$0xff]
    %v704 = vld [vmem:[#allocation14 + $0x8] sm:$0xff]
    %v705 = vld [vmem:[#allocation14 + $0x10] sm:$0xff]
    %v706 = vld [vmem:[#allocation14 + $0x18] sm:$0xff]
    %v707 = vld [vmem:[#allocation14 + $0x20] sm:$0xff]
    %v708 = vld [vmem:[#allocation14 + $0x28] sm:$0xff]
    %v709 = vld [vmem:[#allocation14 + $0x30] sm:$0xff]
    %v710 = vld [vmem:[#allocation14 + $0x38] sm:$0xff]
    %v711 = vld [vmem:[#allocation14 + $0x40] sm:$0xff]
    %v712 = vld [vmem:[#allocation14 + $0x48] sm:$0xff]
    %v713 = vld [vmem:[#allocation14 + $0x50] sm:$0xff]
    %v714 = vld [vmem:[#allocation14 + $0x58] sm:$0xff]
    %v715 = vld [vmem:[#allocation14 + $0x60] sm:$0xff]
    %v716 = vld [vmem:[#allocation14 + $0x68] sm:$0xff]
    %v717 = vld [vmem:[#allocation14 + $0x70] sm:$0xff]
    %v718 = vld [vmem:[#allocation14 + $0x78] sm:$0xff]
    %v719 = vlaneseq
    %v720 = vshrl.u32 %v719, 7
    %v721 = vsub.s32 6, %v720
    %v722 = vrot.slane %v156, %v721
    %723 = vmatprep.subr.mxu0 0.0
    %724 = vmatpush1.msra.mxu0 %v718
    %725 = vmatprep.subr.mxu0 0.0
    %726 = vmatpush1.msra.mxu0 %v717
    %727 = vmatprep.subr.mxu0 0.0
    %728 = vmatpush1.msra.mxu0 %v716
    %729 = vmatprep.subr.mxu0 0.0
    %730 = vmatpush1.msra.mxu0 %v715
    %731 = vmatprep.subr.mxu0 0.0
    %732 = vmatpush1.msra.mxu0 %v714
    %733 = vmatprep.subr.mxu0 0.0
    %734 = vmatpush1.msra.mxu0 %v713
    %735 = vmatprep.subr.mxu0 0.0
    %736 = vmatpush1.msra.mxu0 %v712
    %737 = vmatprep.subr.mxu0 0.0
    %738 = vmatpush1.msra.mxu0 %v711
    %739 = vmatprep.subr.mxu0 0.0
    %740 = vmatpush1.msra.mxu0 %v710
    %741 = vmatprep.subr.mxu0 0.0
    %742 = vmatpush1.msra.mxu0 %v709
    %743 = vmatprep.subr.mxu0 0.0
    %744 = vmatpush1.msra.mxu0 %v708
    %745 = vmatprep.subr.mxu0 0.0
    %746 = vmatpush1.msra.mxu0 %v707
    %747 = vmatprep.subr.mxu0 0.0
    %748 = vmatpush1.msra.mxu0 %v706
    %749 = vmatprep.subr.mxu0 0.0
    %750 = vmatpush1.msra.mxu0 %v705
    %751 = vmatprep.subr.mxu0 0.0
    %752 = vmatpush1.msra.mxu0 %v704
    %753 = vmatprep.subr.mxu0 0.0
    %754 = vmatpush1.msra.mxu0 %v703
    %755 = vmatprep.subr.mxu0 0.0
    %756 = vmatpush2.msra.mxu0 0.0
    %757 = vmatprep.subr.mxu0 0.0
    %758 = vmatpush2.msra.mxu0 0.0
    %759 = vmatprep.subr.mxu0 0.0
    %760 = vmatpush2.msra.mxu0 0.0
    %761 = vmatprep.subr.mxu0 0.0
    %762 = vmatpush2.msra.mxu0 0.0
    %763 = vmatprep.subr.mxu0 0.0
    %764 = vmatpush2.msra.mxu0 0.0
    %765 = vmatprep.subr.mxu0 0.0
    %766 = vmatpush2.msra.mxu0 0.0
    %767 = vmatprep.subr.mxu0 0.0
    %768 = vmatpush2.msra.mxu0 0.0
    %769 = vmatprep.subr.mxu0 0.0
    %770 = vmatpush2.msra.mxu0 0.0
    %771 = vmatprep.subr.mxu0 0.0
    %772 = vmatpush2.msra.mxu0 0.0
    %773 = vmatprep.subr.mxu0 0.0
    %774 = vmatpush2.msra.mxu0 0.0
    %775 = vmatprep.subr.mxu0 0.0
    %776 = vmatpush2.msra.mxu0 0.0
    %777 = vmatprep.subr.mxu0 0.0
    %778 = vmatpush2.msra.mxu0 0.0
    %779 = vmatprep.subr.mxu0 0.0
    %780 = vmatpush2.msra.mxu0 0.0
    %781 = vmatprep.subr.mxu0 0.0
    %782 = vmatpush2.msra.mxu0 0.0
    %783 = vmatprep.subr.mxu0 0.0
    %784 = vmatpush2.msra.mxu0 0.0
    %785 = vmatprep.subr.mxu0 0.0
    %786 = vmatpush2.msra.mxu0 0.0
    %787 = vmatprep.mubr.f32.mxu0 0.0
    %788 = vmatmul.mubr.f32.gmra.mxu0 %v702
    %v789 = vpop.f32.mrf.mxu0
    %v790 = vadd.f32 %v722, %v789
    %v791 = vpop.f32.mrf.mxu0
    %792 = vdwg.mxu0
    %v793 = vmax.f32 %v790, 0.0
    %v794 = vld [vmem:[#allocation16] sm:$0xff]
    %v795 = vld [vmem:[#allocation16 + $0x8] sm:$0xff]
    %v796 = vld [vmem:[#allocation16 + $0x10] sm:$0xff]
    %v797 = vld [vmem:[#allocation16 + $0x18] sm:$0xff]
    %v798 = vld [vmem:[#allocation16 + $0x20] sm:$0xff]
    %v799 = vld [vmem:[#allocation16 + $0x28] sm:$0xff]
    %v800 = vld [vmem:[#allocation16 + $0x30] sm:$0xff]
    %v801 = vld [vmem:[#allocation16 + $0x38] sm:$0xff]
    %v802 = vld [vmem:[#allocation16 + $0x40] sm:$0xff]
    %v803 = vld [vmem:[#allocation16 + $0x48] sm:$0xff]
    %v804 = vld [vmem:[#allocation16 + $0x50] sm:$0xff]
    %v805 = vld [vmem:[#allocation16 + $0x58] sm:$0xff]
    %v806 = vld [vmem:[#allocation16 + $0x60] sm:$0xff]
    %v807 = vld [vmem:[#allocation16 + $0x68] sm:$0xff]
    %v808 = vld [vmem:[#allocation16 + $0x70] sm:$0xff]
    %v809 = vld [vmem:[#allocation16 + $0x78] sm:$0xff]
    %v810 = vlaneseq
    %v811 = vshrl.u32 %v810, 7
    %v812 = vsub.s32 7, %v811
    %v813 = vrot.slane %v156, %v812
    %814 = vmatprep.subr.mxu0 0.0
    %815 = vmatpush1.msra.mxu0 %v809
    %816 = vmatprep.subr.mxu0 0.0
    %817 = vmatpush1.msra.mxu0 %v808
    %818 = vmatprep.subr.mxu0 0.0
    %819 = vmatpush1.msra.mxu0 %v807
    %820 = vmatprep.subr.mxu0 0.0
    %821 = vmatpush1.msra.mxu0 %v806
    %822 = vmatprep.subr.mxu0 0.0
    %823 = vmatpush1.msra.mxu0 %v805
    %824 = vmatprep.subr.mxu0 0.0
    %825 = vmatpush1.msra.mxu0 %v804
    %826 = vmatprep.subr.mxu0 0.0
    %827 = vmatpush1.msra.mxu0 %v803
    %828 = vmatprep.subr.mxu0 0.0
    %829 = vmatpush1.msra.mxu0 %v802
    %830 = vmatprep.subr.mxu0 0.0
    %831 = vmatpush1.msra.mxu0 %v801
    %832 = vmatprep.subr.mxu0 0.0
    %833 = vmatpush1.msra.mxu0 %v800
    %834 = vmatprep.subr.mxu0 0.0
    %835 = vmatpush1.msra.mxu0 %v799
    %836 = vmatprep.subr.mxu0 0.0
    %837 = vmatpush1.msra.mxu0 %v798
    %838 = vmatprep.subr.mxu0 0.0
    %839 = vmatpush1.msra.mxu0 %v797
    %840 = vmatprep.subr.mxu0 0.0
    %841 = vmatpush1.msra.mxu0 %v796
    %842 = vmatprep.subr.mxu0 0.0
    %843 = vmatpush1.msra.mxu0 %v795
    %844 = vmatprep.subr.mxu0 0.0
    %845 = vmatpush1.msra.mxu0 %v794
    %846 = vmatprep.subr.mxu0 0.0
    %847 = vmatpush2.msra.mxu0 0.0
    %848 = vmatprep.subr.mxu0 0.0
    %849 = vmatpush2.msra.mxu0 0.0
    %850 = vmatprep.subr.mxu0 0.0
    %851 = vmatpush2.msra.mxu0 0.0
    %852 = vmatprep.subr.mxu0 0.0
    %853 = vmatpush2.msra.mxu0 0.0
    %854 = vmatprep.subr.mxu0 0.0
    %855 = vmatpush2.msra.mxu0 0.0
    %856 = vmatprep.subr.mxu0 0.0
    %857 = vmatpush2.msra.mxu0 0.0
    %858 = vmatprep.subr.mxu0 0.0
    %859 = vmatpush2.msra.mxu0 0.0
    %860 = vmatprep.subr.mxu0 0.0
    %861 = vmatpush2.msra.mxu0 0.0
    %862 = vmatprep.subr.mxu0 0.0
    %863 = vmatpush2.msra.mxu0 0.0
    %864 = vmatprep.subr.mxu0 0.0
    %865 = vmatpush2.msra.mxu0 0.0
    %866 = vmatprep.subr.mxu0 0.0
    %867 = vmatpush2.msra.mxu0 0.0
    %868 = vmatprep.subr.mxu0 0.0
    %869 = vmatpush2.msra.mxu0 0.0
    %870 = vmatprep.subr.mxu0 0.0
    %871 = vmatpush2.msra.mxu0 0.0
    %872 = vmatprep.subr.mxu0 0.0
    %873 = vmatpush2.msra.mxu0 0.0
    %874 = vmatprep.subr.mxu0 0.0
    %875 = vmatpush2.msra.mxu0 0.0
    %876 = vmatprep.subr.mxu0 0.0
    %877 = vmatpush2.msra.mxu0 0.0
    %878 = vmatprep.mubr.f32.mxu0 0.0
    %879 = vmatmul.mubr.f32.gmra.mxu0 %v793
    %v880 = vpop.f32.mrf.mxu0
    %v881 = vadd.f32 %v813, %v880
    %v882 = vpop.f32.mrf.mxu0
    %883 = vdwg.mxu0
    %884 = vst [vmem:[#allocation17] sm:$0xff] %v881
    // Predicated region
    $region78: #{tpu_custom_call.1} parent=1 // pred_check
      _
    $region79: #{tpu_custom_call.1} parent=1 // pred_check_branch
      %886 = sbr.rel (0) target = $region81
    $region80: #{tpu_custom_call.1} parent=1 // pred_region
      %s888 = ssub.s32 128, 128
      %889 = vsyncadd [#allocation4], %s888
      %s891 = sshll.u32 [#allocation17], 4
      %s892 = int_to_ptr.vmem [resolvable:$true] %s891
      %894 = dma.vmem_to_hbm [thread:$0]  %s892, 128, %s10, [#allocation4]
    $region81: #{tpu_custom_call.1} parent=1 // pred_fallthru
      _
    // Predicated region
    $region82: #{tpu_custom_call.1} parent=1 // pred_check
      _
    $region83: #{tpu_custom_call.1} parent=1 // pred_check_branch
      %896 = sbr.rel (0) target = $region85
    $region84: #{tpu_custom_call.1} parent=1 // pred_region
      %897 = dma.done [#allocation4], 128
    $region85: #{tpu_custom_call.1} parent=1 // pred_fallthru
      _
    %898 = vsyncpa [#allocation3], 1
    %899 = vsyncpa [#allocation6], 1
    %900 = vsyncpa [#allocation9], 1
    %901 = vsyncpa [#allocation12], 1
    %902 = vsyncpa [#allocation15], 1
    %903 = vsyncpa [#allocation4], 1

</llo_original>
